<compile_context>
chip_gen: v6e
topology: v6e:2x2x1
jax: 0.10.0
libtpu: 0.0.40
codegen_flags: <defaults>
</compile_context>

<pallas_src>
import jax
import jax.numpy as jnp
from jax import lax
from jax.experimental import pallas as pl
from jax.experimental.pallas import tpu as pltpu


# dot_general dimension numbers (forms that lower cleanly in Mosaic).
_NN = (((1,), (0,)), ((), ()))   # A @ B
_NT = (((1,), (1,)), ((), ()))   # A @ B^T  (contract last dims of both)


def _stable_complex_tanh_parts(x, y):
    """Numerator/denominator of tanh(x + i*y) in an overflow-free form.

    tanh(x+iy) = (sinh 2x + i sin 2y) / (cosh 2x + cos 2y).  Multiplying
    numerator and denominator by 2*exp(-2|x|):
        re_num = sign(x) * (1 - e^{-4|x|})
        im_num = 2 e^{-2|x|} sin 2y
        denom  = 1 + e^{-4|x|} + 2 e^{-2|x|} cos 2y
    Only one exp per element; saturates to sign(x) for large |x| instead of
    producing inf/inf = NaN.  (Pole at x=0, cos2y=-1 is inherent to the math.)
    """
    a = 2.0 * x
    b = 2.0 * y
    ea = jnp.exp(-jnp.abs(a))            # e^{-2|x|}
    ea2 = ea * ea                        # e^{-4|x|}
    denom = 1.0 + ea2 + 2.0 * ea * jnp.cos(b)
    sgn = jnp.where(a >= 0.0, 1.0, -1.0)
    re_num = sgn * (1.0 - ea2)
    im_num = 2.0 * ea * jnp.sin(b)
    return re_num, im_num, denom


# --------------------------------------------------------------------------
# Pallas kernel: complex frequency attention for one head, all batches.
# Ref shapes (head dim squeezed out by the BlockSpec):
#   qt_ref : (B, 2, M, E)  real/imag of Q^T (mode-major layout)
#   k_ref  : (B, 2, E, M)  real/imag of K
#   w_ref  : (2, E, O, M)  real/imag of this head's per-mode weights
#   out_ref: (B, 2, O, M)  real/imag of the result
# --------------------------------------------------------------------------
def _freq_attn_kernel(qt_ref, k_ref, w_ref, out_ref):
    f32 = jnp.float32
    B = qt_ref.shape[0]
    E = k_ref.shape[2]

    # Weights loaded once per grid step (per head); resident across the b loop.
    wr = w_ref[0]                        # (E, O, M)
    wi = w_ref[1]

    for b in range(B):                   # B is small & static -> unrolled
        qtr = qt_ref[b, 0]               # (M, E) == real(Q)^T
        qti = qt_ref[b, 1]
        kr = k_ref[b, 0]                 # (E, M)
        ki = k_ref[b, 1]

        # S = Q^T K (complex): S[x, y] = sum_e Q[e, x] K[e, y]      -> (M, M)
        sr = (lax.dot_general(qtr, kr, _NN, preferred_element_type=f32)
              - lax.dot_general(qti, ki, _NN, preferred_element_type=f32))
        si = (lax.dot_general(qtr, ki, _NN, preferred_element_type=f32)
              + lax.dot_general(qti, kr, _NN, preferred_element_type=f32))

        # T = tanh(S): one exp + one approximate EUP reciprocal per element.
        nr, ni, den = _stable_complex_tanh_parts(sr, si)
        inv = pl.reciprocal(den, approx=True)
        tr = nr * inv
        ti = ni * inv

        # A = K T^T (complex): A[e, x] = sum_y K[e, y] T[x, y]      -> (E, M)
        ar = (lax.dot_general(kr, tr, _NT, preferred_element_type=f32)
              - lax.dot_general(ki, ti, _NT, preferred_element_type=f32))
        ai = (lax.dot_general(kr, ti, _NT, preferred_element_type=f32)
              + lax.dot_general(ki, tr, _NT, preferred_element_type=f32))

        # out[o, x] = sum_e A[e, x] * W[e, o, x]  — E tiny: unrolled VPU FMAs.
        outr = ar[0] * wr[0] - ai[0] * wi[0]
        outi = ar[0] * wi[0] + ai[0] * wr[0]
        for e in range(1, E):
            are, aie = ar[e], ai[e]
            outr = outr + are * wr[e] - aie * wi[e]
            outi = outi + are * wi[e] + aie * wr[e]

        out_ref[b, 0] = outr
        out_ref[b, 1] = outi


def freq_attention_pallas(qt_pack, k_pack, w_pack):
    """qt_pack: (B,H,2,M,E), k_pack: (B,H,2,E,M), w_pack: (H,2,E,O,M), all f32.
    Returns (B,H,2,O,M) f32 with index 0 = real part, 1 = imag part."""
    B, H, _, M, E = qt_pack.shape
    O = w_pack.shape[3]
    return pl.pallas_call(
        _freq_attn_kernel,
        out_shape=jax.ShapeDtypeStruct((B, H, 2, O, M), jnp.float32),
        grid=(H,),
        in_specs=[
            pl.BlockSpec((B, None, 2, M, E), lambda h: (0, h, 0, 0, 0)),
            pl.BlockSpec((B, None, 2, E, M), lambda h: (0, h, 0, 0, 0)),
            pl.BlockSpec((None, 2, E, O, M), lambda h: (h, 0, 0, 0, 0)),
        ],
        out_specs=pl.BlockSpec((B, None, 2, O, M), lambda h: (0, h, 0, 0, 0)),
        compiler_params=pltpu.CompilerParams(
            dimension_semantics=("parallel",)),
    )(qt_pack, k_pack, w_pack)


# --------------------------------------------------------------------------
# Full forward (plain-JAX glue around the Pallas hot path).
# --------------------------------------------------------------------------
def alignment_frequency_attention(q, k, v, indexq, indexk, mask,
                                  w_real, w_imag,
                                  in_channels, out_channels, topk,
                                  qsign=1, ksign=1, activation="tanh"):
    del v, mask  # unused in the reference forward
    B, L, H, E = q.shape
    xq = jnp.transpose(q, (0, 2, 3, 1)).astype(jnp.float32)   # (B, H, E, L)
    xk = jnp.transpose(k, (0, 2, 3, 1)).astype(jnp.float32)

    xq_ft = jnp.fft.rfft(xq, axis=-1)                         # (B, H, E, L//2+1)
    xk_ft = jnp.fft.rfft(xk, axis=-1)

    # --- Q mode selection ---
    xq_mean = jnp.abs(xq_ft).mean(axis=(0, 1, 2))
    _, qindex = lax.top_k(xq_mean, topk)
    topqindex = qindex if qsign == 1 else indexq
    xq_sel = xq_ft[..., topqindex]                            # (B, H, E, topk)

    # --- K mode selection (reference always gathers with the computed index) ---
    xk_mean = jnp.abs(xk_ft).mean(axis=(0, 1, 2)).at[0].set(0.0)
    _, kindex = lax.top_k(xk_mean, topk)
    xk_sel = xk_ft[..., kindex]                               # (B, H, E, topk)

    assert activation == "tanh"  # TODO(synk): 'softmax' branch not implemented

    # Pack real/imag into 3 f32 arrays (fewer DMA descriptors) and pre-transpose
    # Q so every in-kernel matmul is NN or NT (no transposed-LHS contractions).
    qt = jnp.swapaxes(xq_sel, -1, -2)                                       # (B,H,M,E)
    qt_pack = jnp.stack([jnp.real(qt), jnp.imag(qt)], axis=2).astype(jnp.float32)
    k_pack = jnp.stack([jnp.real(xk_sel), jnp.imag(xk_sel)], axis=2).astype(jnp.float32)
    w_pack = jnp.stack([w_real, w_imag], axis=1).astype(jnp.float32)        # (H,2,E,O,M)

    out_pack = freq_attention_pallas(qt_pack, k_pack, w_pack)               # (B,H,2,O,M)
    xqkvw = (out_pack[:, :, 0] + 1j * out_pack[:, :, 1]).astype(jnp.complex64)

    # Scatter back to the full spectrum and inverse rFFT.
    # NOTE: relies on O == E (in_channels == out_channels), as in the reference.
    F = L // 2 + 1
    out_ft = jnp.zeros((B, H, E, F), dtype=jnp.complex64)
    out_ft = out_ft.at[:, :, :, topqindex].set(xqkvw)
    out = jnp.fft.irfft(out_ft / in_channels / out_channels, n=L, axis=-1)
    return out, None


# --------------------------------------------------------------------------
# Pure-JAX end-to-end reference (same math, plain XLA) for sanity checking.
# --------------------------------------------------------------------------
def _forward_ref(q, k, w_real, w_imag, in_channels, out_channels, topk):
    B, L, H, E = q.shape
    xq = jnp.transpose(q, (0, 2, 3, 1)).astype(jnp.float32)
    xk = jnp.transpose(k, (0, 2, 3, 1)).astype(jnp.float32)
    xq_ft = jnp.fft.rfft(xq, axis=-1)
    xk_ft = jnp.fft.rfft(xk, axis=-1)
    _, qindex = lax.top_k(jnp.abs(xq_ft).mean(axis=(0, 1, 2)), topk)
    km = jnp.abs(xk_ft).mean(axis=(0, 1, 2)).at[0].set(0.0)
    _, kindex = lax.top_k(km, topk)
    qc, kc = xq_ft[..., qindex], xk_ft[..., kindex]
    wc = w_real + 1j * w_imag
    hi = lax.Precision.HIGHEST
    s = jnp.einsum("bhex,bhey->bhxy", qc, kc, precision=hi)
    nr, ni, den = _stable_complex_tanh_parts(jnp.real(s), jnp.imag(s))
    t = (nr + 1j * ni) / den
    a = jnp.einsum("bhxy,bhey->bhex", t, kc, precision=hi)
    o = jnp.einsum("bhex,heox->bhox", a, wc, precision=hi)
    F = L // 2 + 1
    out_ft = jnp.zeros((B, H, E, F), dtype=jnp.complex64)
    out_ft = out_ft.at[:, :, :, qindex].set(o.astype(jnp.complex64))
    return jnp.fft.irfft(out_ft / in_channels / out_channels, n=L, axis=-1)


if __name__ == "__main__":
    # Shapes implied by the module: q,k,v = (B, L, H, E) with H == 8,
    # E == in_channels // 8, and in_channels == out_channels.
    B, L, H, E = 2, 16, 8, 4
    in_channels = out_channels = 8 * E        # 32
    modes = 64
    topk = min(modes, L // 2)                 # 8
    O = out_channels // 8                     # 4
    scale = 1.0 / (in_channels * out_channels)

    key = jax.random.PRNGKey(0)
    kq, kk, kv, kwr, kwi = jax.random.split(key, 5)
    # Moderate input magnitude keeps the (unscaled, as in the reference) Q^T K
    # scores in a well-conditioned tanh range for the numeric cross-check.
    q = 0.2 * jax.random.normal(kq, (B, L, H, E), dtype=jnp.float32)
    k = 0.2 * jax.random.normal(kk, (B, L, H, E), dtype=jnp.float32)
    v = 0.2 * jax.random.normal(kv, (B, L, H, E), dtype=jnp.float32)
    w_real = (scale * jax.random.uniform(kwr, (8, E, O, topk))).astype(jnp.float32)
    w_imag = (scale * jax.random.uniform(kwi, (8, E, O, topk))).astype(jnp.float32)
    indexq = jnp.arange(topk, dtype=jnp.int32)   # unused when qsign == 1
    indexk = jnp.arange(topk, dtype=jnp.int32)   # unused when ksign == 1

    out, attn = alignment_frequency_attention(
        q, k, v, indexq, indexk, None, w_real, w_imag,
        in_channels, out_channels, topk, qsign=1, ksign=1)
    out = jax.block_until_ready(out)
    assert out.shape == (B, H, E, L) and out.dtype == jnp.float32 and attn is None
    assert bool(jnp.all(jnp.isfinite(out))), "non-finite values in kernel output"

    # 1) Stable complex-tanh reformulation vs the textbook formula on a
    #    well-conditioned grid (no overflow, far from the poles).
    xs = jnp.linspace(-4.0, 4.0, 8)
    ys = jnp.linspace(-1.2, 1.2, 8)
    X, Y = jnp.meshgrid(xs, ys)
    nr, ni, den = _stable_complex_tanh_parts(X, Y)
    t_mine = (nr + 1j * ni) / den
    t_ref = (jnp.sinh(2.0 * X) + 1j * jnp.sin(2.0 * Y)) / (jnp.cosh(2.0 * X) + jnp.cos(2.0 * Y))
    tanh_err = float(jnp.max(jnp.abs(t_mine - t_ref)))
    assert tanh_err < 1e-4, f"stable tanh mismatch: {tanh_err}"

    # 2) End-to-end Pallas forward vs pure-XLA reference (tolerance absorbs
    #    MXU-vs-XLA matmul precision and the approximate EUP reciprocal).
    ref_out = jax.block_until_ready(
        _forward_ref(q, k, w_real, w_imag, in_channels, out_channels, topk))
    rel_err = float(jnp.max(jnp.abs(out - ref_out)) /
                    (jnp.max(jnp.abs(ref_out)) + 1e-12))
    assert rel_err < 5e-2, f"forward mismatch vs reference: {rel_err}"

    print("KERNEL_OK")
</pallas_src>

<mosaic_0001>
module attributes {stable_mosaic.version = 11 : i64} {
  func.func @_freq_attn_kernel(%arg0: i32, %arg1: memref<2x1x2x8x4xf32, #tpu.memory_space<vmem>>, %arg2: memref<2x1x2x4x8xf32, #tpu.memory_space<vmem>>, %arg3: memref<1x2x4x4x8xf32, #tpu.memory_space<vmem>>, %arg4: memref<2x1x2x4x8xf32, #tpu.memory_space<vmem>>) attributes {dimension_semantics = [#tpu.dimension_semantics<parallel>], iteration_bounds = array<i64: 8>, scalar_prefetch = 0 : i64, scratch_operands = 0 : i64, tpu.core_type = #tpu.core_type<tc>, window_params = [{transform_indices = @transform_0, window_bounds = array<i64: 2, 1, 2, 8, 4>}, {transform_indices = @transform_1, window_bounds = array<i64: 2, 1, 2, 4, 8>}, {transform_indices = @transform_2, window_bounds = array<i64: 1, 2, 4, 4, 8>}, {transform_indices = @transform_3, window_bounds = array<i64: 2, 1, 2, 4, 8>}]} {
    %c0 = arith.constant 0 : index
    %c0_0 = arith.constant 0 : index
    %c0_1 = arith.constant 0 : index
    %c0_2 = arith.constant 0 : index
    %c0_3 = arith.constant 0 : index
    %0 = vector.load %arg3[%c0, %c0_0, %c0_1, %c0_2, %c0_3] : memref<1x2x4x4x8xf32, #tpu.memory_space<vmem>>, vector<1x1x4x4x8xf32>
    %1 = vector.shape_cast %0 : vector<1x1x4x4x8xf32> to vector<4x4x8xf32>
    %c0_4 = arith.constant 0 : index
    %c1 = arith.constant 1 : index
    %c0_5 = arith.constant 0 : index
    %c0_6 = arith.constant 0 : index
    %c0_7 = arith.constant 0 : index
    %2 = vector.load %arg3[%c0_4, %c1, %c0_5, %c0_6, %c0_7] : memref<1x2x4x4x8xf32, #tpu.memory_space<vmem>>, vector<1x1x4x4x8xf32>
    %3 = vector.shape_cast %2 : vector<1x1x4x4x8xf32> to vector<4x4x8xf32>
    %c0_8 = arith.constant 0 : index
    %c0_9 = arith.constant 0 : index
    %c0_10 = arith.constant 0 : index
    %c0_11 = arith.constant 0 : index
    %c0_12 = arith.constant 0 : index
    %4 = vector.load %arg1[%c0_8, %c0_9, %c0_10, %c0_11, %c0_12] : memref<2x1x2x8x4xf32, #tpu.memory_space<vmem>>, vector<1x1x1x8x4xf32>
    %5 = vector.shape_cast %4 : vector<1x1x1x8x4xf32> to vector<8x4xf32>
    %c0_13 = arith.constant 0 : index
    %c0_14 = arith.constant 0 : index
    %c1_15 = arith.constant 1 : index
    %c0_16 = arith.constant 0 : index
    %c0_17 = arith.constant 0 : index
    %6 = vector.load %arg1[%c0_13, %c0_14, %c1_15, %c0_16, %c0_17] : memref<2x1x2x8x4xf32, #tpu.memory_space<vmem>>, vector<1x1x1x8x4xf32>
    %7 = vector.shape_cast %6 : vector<1x1x1x8x4xf32> to vector<8x4xf32>
    %c0_18 = arith.constant 0 : index
    %c0_19 = arith.constant 0 : index
    %c0_20 = arith.constant 0 : index
    %c0_21 = arith.constant 0 : index
    %c0_22 = arith.constant 0 : index
    %8 = vector.load %arg2[%c0_18, %c0_19, %c0_20, %c0_21, %c0_22] : memref<2x1x2x4x8xf32, #tpu.memory_space<vmem>>, vector<1x1x1x4x8xf32>
    %9 = vector.shape_cast %8 : vector<1x1x1x4x8xf32> to vector<4x8xf32>
    %c0_23 = arith.constant 0 : index
    %c0_24 = arith.constant 0 : index
    %c1_25 = arith.constant 1 : index
    %c0_26 = arith.constant 0 : index
    %c0_27 = arith.constant 0 : index
    %10 = vector.load %arg2[%c0_23, %c0_24, %c1_25, %c0_26, %c0_27] : memref<2x1x2x4x8xf32, #tpu.memory_space<vmem>>, vector<1x1x1x4x8xf32>
    %11 = vector.shape_cast %10 : vector<1x1x1x4x8xf32> to vector<4x8xf32>
    %cst = arith.constant dense<0.000000e+00> : vector<8x8xf32>
    %12 = tpu.matmul %5, %9, %cst {dimension_numbers = #tpu.dot_dimension_numbers<[1], [0], [0], [1], [0, 0, 1, 1], [], []>} : vector<8x4xf32>, vector<4x8xf32>, vector<8x8xf32> -> vector<8x8xf32>
    %cst_28 = arith.constant dense<0.000000e+00> : vector<8x8xf32>
    %13 = tpu.matmul %7, %11, %cst_28 {dimension_numbers = #tpu.dot_dimension_numbers<[1], [0], [0], [1], [0, 0, 1, 1], [], []>} : vector<8x4xf32>, vector<4x8xf32>, vector<8x8xf32> -> vector<8x8xf32>
    %14 = arith.subf %12, %13 : vector<8x8xf32>
    %cst_29 = arith.constant dense<0.000000e+00> : vector<8x8xf32>
    %15 = tpu.matmul %5, %11, %cst_29 {dimension_numbers = #tpu.dot_dimension_numbers<[1], [0], [0], [1], [0, 0, 1, 1], [], []>} : vector<8x4xf32>, vector<4x8xf32>, vector<8x8xf32> -> vector<8x8xf32>
    %cst_30 = arith.constant dense<0.000000e+00> : vector<8x8xf32>
    %16 = tpu.matmul %7, %9, %cst_30 {dimension_numbers = #tpu.dot_dimension_numbers<[1], [0], [0], [1], [0, 0, 1, 1], [], []>} : vector<8x4xf32>, vector<4x8xf32>, vector<8x8xf32> -> vector<8x8xf32>
    %17 = arith.addf %15, %16 : vector<8x8xf32>
    %cst_31 = arith.constant 2.000000e+00 : f32
    %18 = vector.broadcast %cst_31 : f32 to vector<8x8xf32>
    %19 = arith.mulf %18, %14 : vector<8x8xf32>
    %cst_32 = arith.constant 2.000000e+00 : f32
    %20 = vector.broadcast %cst_32 : f32 to vector<8x8xf32>
    %21 = arith.mulf %20, %17 : vector<8x8xf32>
    %22 = math.absf %19 : vector<8x8xf32>
    %cst_33 = arith.constant 0.000000e+00 : f32
    %23 = vector.broadcast %cst_33 : f32 to vector<8x8xf32>
    %24 = arith.subf %23, %22 : vector<8x8xf32>
    %25 = math.exp %24 : vector<8x8xf32>
    %26 = arith.mulf %25, %25 : vector<8x8xf32>
    %cst_34 = arith.constant 1.000000e+00 : f32
    %27 = vector.broadcast %cst_34 : f32 to vector<8x8xf32>
    %28 = arith.addf %27, %26 : vector<8x8xf32>
    %cst_35 = arith.constant 2.000000e+00 : f32
    %29 = vector.broadcast %cst_35 : f32 to vector<8x8xf32>
    %30 = arith.mulf %29, %25 : vector<8x8xf32>
    %31 = math.cos %21 : vector<8x8xf32>
    %32 = arith.mulf %30, %31 : vector<8x8xf32>
    %33 = arith.addf %28, %32 : vector<8x8xf32>
    %cst_36 = arith.constant 0.000000e+00 : f32
    %34 = vector.broadcast %cst_36 : f32 to vector<8x8xf32>
    %35 = arith.cmpf oge, %19, %34 : vector<8x8xf32>
    %cst_37 = arith.constant 1.000000e+00 : f32
    %cst_38 = arith.constant -1.000000e+00 : f32
    %36 = vector.broadcast %cst_37 : f32 to vector<8x8xf32>
    %37 = vector.broadcast %cst_38 : f32 to vector<8x8xf32>
    %38 = arith.select %35, %36, %37 : vector<8x8xi1>, vector<8x8xf32>
    %cst_39 = arith.constant 1.000000e+00 : f32
    %39 = vector.broadcast %cst_39 : f32 to vector<8x8xf32>
    %40 = arith.subf %39, %26 : vector<8x8xf32>
    %41 = arith.mulf %38, %40 : vector<8x8xf32>
    %cst_40 = arith.constant 2.000000e+00 : f32
    %42 = vector.broadcast %cst_40 : f32 to vector<8x8xf32>
    %43 = arith.mulf %42, %25 : vector<8x8xf32>
    %44 = math.sin %21 : vector<8x8xf32>
    %45 = arith.mulf %43, %44 : vector<8x8xf32>
    %46 = tpu.reciprocal %33 {approx = true} : vector<8x8xf32> -> vector<8x8xf32>
    %47 = arith.mulf %41, %46 : vector<8x8xf32>
    %48 = arith.mulf %45, %46 : vector<8x8xf32>
    %cst_41 = arith.constant dense<0.000000e+00> : vector<4x8xf32>
    %49 = tpu.matmul %9, %47, %cst_41 {dimension_numbers = #tpu.dot_dimension_numbers<[1], [1], [0], [0], [0, 0, 1, 0], [], []>} : vector<4x8xf32>, vector<8x8xf32>, vector<4x8xf32> -> vector<4x8xf32>
    %cst_42 = arith.constant dense<0.000000e+00> : vector<4x8xf32>
    %50 = tpu.matmul %11, %48, %cst_42 {dimension_numbers = #tpu.dot_dimension_numbers<[1], [1], [0], [0], [0, 0, 1, 0], [], []>} : vector<4x8xf32>, vector<8x8xf32>, vector<4x8xf32> -> vector<4x8xf32>
    %51 = arith.subf %49, %50 : vector<4x8xf32>
    %cst_43 = arith.constant dense<0.000000e+00> : vector<4x8xf32>
    %52 = tpu.matmul %9, %48, %cst_43 {dimension_numbers = #tpu.dot_dimension_numbers<[1], [1], [0], [0], [0, 0, 1, 0], [], []>} : vector<4x8xf32>, vector<8x8xf32>, vector<4x8xf32> -> vector<4x8xf32>
    %cst_44 = arith.constant dense<0.000000e+00> : vector<4x8xf32>
    %53 = tpu.matmul %11, %47, %cst_44 {dimension_numbers = #tpu.dot_dimension_numbers<[1], [1], [0], [0], [0, 0, 1, 0], [], []>} : vector<4x8xf32>, vector<8x8xf32>, vector<4x8xf32> -> vector<4x8xf32>
    %54 = arith.addf %52, %53 : vector<4x8xf32>
    %55 = vector.extract_strided_slice %51 {offsets = [0, 0], sizes = [1, 8], strides = [1, 1]} : vector<4x8xf32> to vector<1x8xf32>
    %56 = vector.shape_cast %55 : vector<1x8xf32> to vector<8xf32>
    %57 = vector.extract_strided_slice %1 {offsets = [0, 0, 0], sizes = [1, 4, 8], strides = [1, 1, 1]} : vector<4x4x8xf32> to vector<1x4x8xf32>
    %58 = vector.shape_cast %57 : vector<1x4x8xf32> to vector<4x8xf32>
    %59 = vector.shape_cast %56 : vector<8xf32> to vector<1x8xf32>
    %60 = vector.broadcast %59 : vector<1x8xf32> to vector<4x8xf32>
    %61 = arith.mulf %60, %58 : vector<4x8xf32>
    %62 = vector.extract_strided_slice %54 {offsets = [0, 0], sizes = [1, 8], strides = [1, 1]} : vector<4x8xf32> to vector<1x8xf32>
    %63 = vector.shape_cast %62 : vector<1x8xf32> to vector<8xf32>
    %64 = vector.extract_strided_slice %3 {offsets = [0, 0, 0], sizes = [1, 4, 8], strides = [1, 1, 1]} : vector<4x4x8xf32> to vector<1x4x8xf32>
    %65 = vector.shape_cast %64 : vector<1x4x8xf32> to vector<4x8xf32>
    %66 = vector.shape_cast %63 : vector<8xf32> to vector<1x8xf32>
    %67 = vector.broadcast %66 : vector<1x8xf32> to vector<4x8xf32>
    %68 = arith.mulf %67, %65 : vector<4x8xf32>
    %69 = arith.subf %61, %68 : vector<4x8xf32>
    %70 = vector.extract_strided_slice %51 {offsets = [0, 0], sizes = [1, 8], strides = [1, 1]} : vector<4x8xf32> to vector<1x8xf32>
    %71 = vector.shape_cast %70 : vector<1x8xf32> to vector<8xf32>
    %72 = vector.extract_strided_slice %3 {offsets = [0, 0, 0], sizes = [1, 4, 8], strides = [1, 1, 1]} : vector<4x4x8xf32> to vector<1x4x8xf32>
    %73 = vector.shape_cast %72 : vector<1x4x8xf32> to vector<4x8xf32>
    %74 = vector.shape_cast %71 : vector<8xf32> to vector<1x8xf32>
    %75 = vector.broadcast %74 : vector<1x8xf32> to vector<4x8xf32>
    %76 = arith.mulf %75, %73 : vector<4x8xf32>
    %77 = vector.extract_strided_slice %54 {offsets = [0, 0], sizes = [1, 8], strides = [1, 1]} : vector<4x8xf32> to vector<1x8xf32>
    %78 = vector.shape_cast %77 : vector<1x8xf32> to vector<8xf32>
    %79 = vector.extract_strided_slice %1 {offsets = [0, 0, 0], sizes = [1, 4, 8], strides = [1, 1, 1]} : vector<4x4x8xf32> to vector<1x4x8xf32>
    %80 = vector.shape_cast %79 : vector<1x4x8xf32> to vector<4x8xf32>
    %81 = vector.shape_cast %78 : vector<8xf32> to vector<1x8xf32>
    %82 = vector.broadcast %81 : vector<1x8xf32> to vector<4x8xf32>
    %83 = arith.mulf %82, %80 : vector<4x8xf32>
    %84 = arith.addf %76, %83 : vector<4x8xf32>
    %85 = vector.extract_strided_slice %51 {offsets = [1, 0], sizes = [1, 8], strides = [1, 1]} : vector<4x8xf32> to vector<1x8xf32>
    %86 = vector.shape_cast %85 : vector<1x8xf32> to vector<8xf32>
    %87 = vector.extract_strided_slice %54 {offsets = [1, 0], sizes = [1, 8], strides = [1, 1]} : vector<4x8xf32> to vector<1x8xf32>
    %88 = vector.shape_cast %87 : vector<1x8xf32> to vector<8xf32>
    %89 = vector.extract_strided_slice %1 {offsets = [1, 0, 0], sizes = [1, 4, 8], strides = [1, 1, 1]} : vector<4x4x8xf32> to vector<1x4x8xf32>
    %90 = vector.shape_cast %89 : vector<1x4x8xf32> to vector<4x8xf32>
    %91 = vector.shape_cast %86 : vector<8xf32> to vector<1x8xf32>
    %92 = vector.broadcast %91 : vector<1x8xf32> to vector<4x8xf32>
    %93 = arith.mulf %92, %90 : vector<4x8xf32>
    %94 = arith.addf %69, %93 : vector<4x8xf32>
    %95 = vector.extract_strided_slice %3 {offsets = [1, 0, 0], sizes = [1, 4, 8], strides = [1, 1, 1]} : vector<4x4x8xf32> to vector<1x4x8xf32>
    %96 = vector.shape_cast %95 : vector<1x4x8xf32> to vector<4x8xf32>
    %97 = vector.shape_cast %88 : vector<8xf32> to vector<1x8xf32>
    %98 = vector.broadcast %97 : vector<1x8xf32> to vector<4x8xf32>
    %99 = arith.mulf %98, %96 : vector<4x8xf32>
    %100 = arith.subf %94, %99 : vector<4x8xf32>
    %101 = vector.extract_strided_slice %3 {offsets = [1, 0, 0], sizes = [1, 4, 8], strides = [1, 1, 1]} : vector<4x4x8xf32> to vector<1x4x8xf32>
    %102 = vector.shape_cast %101 : vector<1x4x8xf32> to vector<4x8xf32>
    %103 = vector.shape_cast %86 : vector<8xf32> to vector<1x8xf32>
    %104 = vector.broadcast %103 : vector<1x8xf32> to vector<4x8xf32>
    %105 = arith.mulf %104, %102 : vector<4x8xf32>
    %106 = arith.addf %84, %105 : vector<4x8xf32>
    %107 = vector.extract_strided_slice %1 {offsets = [1, 0, 0], sizes = [1, 4, 8], strides = [1, 1, 1]} : vector<4x4x8xf32> to vector<1x4x8xf32>
    %108 = vector.shape_cast %107 : vector<1x4x8xf32> to vector<4x8xf32>
    %109 = vector.shape_cast %88 : vector<8xf32> to vector<1x8xf32>
    %110 = vector.broadcast %109 : vector<1x8xf32> to vector<4x8xf32>
    %111 = arith.mulf %110, %108 : vector<4x8xf32>
    %112 = arith.addf %106, %111 : vector<4x8xf32>
    %113 = vector.extract_strided_slice %51 {offsets = [2, 0], sizes = [1, 8], strides = [1, 1]} : vector<4x8xf32> to vector<1x8xf32>
    %114 = vector.shape_cast %113 : vector<1x8xf32> to vector<8xf32>
    %115 = vector.extract_strided_slice %54 {offsets = [2, 0], sizes = [1, 8], strides = [1, 1]} : vector<4x8xf32> to vector<1x8xf32>
    %116 = vector.shape_cast %115 : vector<1x8xf32> to vector<8xf32>
    %117 = vector.extract_strided_slice %1 {offsets = [2, 0, 0], sizes = [1, 4, 8], strides = [1, 1, 1]} : vector<4x4x8xf32> to vector<1x4x8xf32>
    %118 = vector.shape_cast %117 : vector<1x4x8xf32> to vector<4x8xf32>
    %119 = vector.shape_cast %114 : vector<8xf32> to vector<1x8xf32>
    %120 = vector.broadcast %119 : vector<1x8xf32> to vector<4x8xf32>
    %121 = arith.mulf %120, %118 : vector<4x8xf32>
    %122 = arith.addf %100, %121 : vector<4x8xf32>
    %123 = vector.extract_strided_slice %3 {offsets = [2, 0, 0], sizes = [1, 4, 8], strides = [1, 1, 1]} : vector<4x4x8xf32> to vector<1x4x8xf32>
    %124 = vector.shape_cast %123 : vector<1x4x8xf32> to vector<4x8xf32>
    %125 = vector.shape_cast %116 : vector<8xf32> to vector<1x8xf32>
    %126 = vector.broadcast %125 : vector<1x8xf32> to vector<4x8xf32>
    %127 = arith.mulf %126, %124 : vector<4x8xf32>
    %128 = arith.subf %122, %127 : vector<4x8xf32>
    %129 = vector.extract_strided_slice %3 {offsets = [2, 0, 0], sizes = [1, 4, 8], strides = [1, 1, 1]} : vector<4x4x8xf32> to vector<1x4x8xf32>
    %130 = vector.shape_cast %129 : vector<1x4x8xf32> to vector<4x8xf32>
    %131 = vector.shape_cast %114 : vector<8xf32> to vector<1x8xf32>
    %132 = vector.broadcast %131 : vector<1x8xf32> to vector<4x8xf32>
    %133 = arith.mulf %132, %130 : vector<4x8xf32>
    %134 = arith.addf %112, %133 : vector<4x8xf32>
    %135 = vector.extract_strided_slice %1 {offsets = [2, 0, 0], sizes = [1, 4, 8], strides = [1, 1, 1]} : vector<4x4x8xf32> to vector<1x4x8xf32>
    %136 = vector.shape_cast %135 : vector<1x4x8xf32> to vector<4x8xf32>
    %137 = vector.shape_cast %116 : vector<8xf32> to vector<1x8xf32>
    %138 = vector.broadcast %137 : vector<1x8xf32> to vector<4x8xf32>
    %139 = arith.mulf %138, %136 : vector<4x8xf32>
    %140 = arith.addf %134, %139 : vector<4x8xf32>
    %141 = vector.extract_strided_slice %51 {offsets = [3, 0], sizes = [1, 8], strides = [1, 1]} : vector<4x8xf32> to vector<1x8xf32>
    %142 = vector.shape_cast %141 : vector<1x8xf32> to vector<8xf32>
    %143 = vector.extract_strided_slice %54 {offsets = [3, 0], sizes = [1, 8], strides = [1, 1]} : vector<4x8xf32> to vector<1x8xf32>
    %144 = vector.shape_cast %143 : vector<1x8xf32> to vector<8xf32>
    %145 = vector.extract_strided_slice %1 {offsets = [3, 0, 0], sizes = [1, 4, 8], strides = [1, 1, 1]} : vector<4x4x8xf32> to vector<1x4x8xf32>
    %146 = vector.shape_cast %145 : vector<1x4x8xf32> to vector<4x8xf32>
    %147 = vector.shape_cast %142 : vector<8xf32> to vector<1x8xf32>
    %148 = vector.broadcast %147 : vector<1x8xf32> to vector<4x8xf32>
    %149 = arith.mulf %148, %146 : vector<4x8xf32>
    %150 = arith.addf %128, %149 : vector<4x8xf32>
    %151 = vector.extract_strided_slice %3 {offsets = [3, 0, 0], sizes = [1, 4, 8], strides = [1, 1, 1]} : vector<4x4x8xf32> to vector<1x4x8xf32>
    %152 = vector.shape_cast %151 : vector<1x4x8xf32> to vector<4x8xf32>
    %153 = vector.shape_cast %144 : vector<8xf32> to vector<1x8xf32>
    %154 = vector.broadcast %153 : vector<1x8xf32> to vector<4x8xf32>
    %155 = arith.mulf %154, %152 : vector<4x8xf32>
    %156 = arith.subf %150, %155 : vector<4x8xf32>
    %157 = vector.extract_strided_slice %3 {offsets = [3, 0, 0], sizes = [1, 4, 8], strides = [1, 1, 1]} : vector<4x4x8xf32> to vector<1x4x8xf32>
    %158 = vector.shape_cast %157 : vector<1x4x8xf32> to vector<4x8xf32>
    %159 = vector.shape_cast %142 : vector<8xf32> to vector<1x8xf32>
    %160 = vector.broadcast %159 : vector<1x8xf32> to vector<4x8xf32>
    %161 = arith.mulf %160, %158 : vector<4x8xf32>
    %162 = arith.addf %140, %161 : vector<4x8xf32>
    %163 = vector.extract_strided_slice %1 {offsets = [3, 0, 0], sizes = [1, 4, 8], strides = [1, 1, 1]} : vector<4x4x8xf32> to vector<1x4x8xf32>
    %164 = vector.shape_cast %163 : vector<1x4x8xf32> to vector<4x8xf32>
    %165 = vector.shape_cast %144 : vector<8xf32> to vector<1x8xf32>
    %166 = vector.broadcast %165 : vector<1x8xf32> to vector<4x8xf32>
    %167 = arith.mulf %166, %164 : vector<4x8xf32>
    %168 = arith.addf %162, %167 : vector<4x8xf32>
    %c0_45 = arith.constant 0 : index
    %c0_46 = arith.constant 0 : index
    %c0_47 = arith.constant 0 : index
    %c0_48 = arith.constant 0 : index
    %c0_49 = arith.constant 0 : index
    %169 = vector.load %arg4[%c0_45, %c0_46, %c0_47, %c0_48, %c0_49] : memref<2x1x2x4x8xf32, #tpu.memory_space<vmem>>, vector<1x1x1x4x8xf32>
    %170 = vector.shape_cast %169 : vector<1x1x1x4x8xf32> to vector<4x8xf32>
    %171 = vector.shape_cast %156 : vector<4x8xf32> to vector<1x1x1x4x8xf32>
    tpu.vector_store %arg4[%c0_45, %c0_46, %c0_47, %c0_48, %c0_49], %171 {strides = array<i32>} : memref<2x1x2x4x8xf32, #tpu.memory_space<vmem>>, vector<1x1x1x4x8xf32>,
    %c0_50 = arith.constant 0 : index
    %c0_51 = arith.constant 0 : index
    %c1_52 = arith.constant 1 : index
    %c0_53 = arith.constant 0 : index
    %c0_54 = arith.constant 0 : index
    %172 = vector.load %arg4[%c0_50, %c0_51, %c1_52, %c0_53, %c0_54] : memref<2x1x2x4x8xf32, #tpu.memory_space<vmem>>, vector<1x1x1x4x8xf32>
    %173 = vector.shape_cast %172 : vector<1x1x1x4x8xf32> to vector<4x8xf32>
    %174 = vector.shape_cast %168 : vector<4x8xf32> to vector<1x1x1x4x8xf32>
    tpu.vector_store %arg4[%c0_50, %c0_51, %c1_52, %c0_53, %c0_54], %174 {strides = array<i32>} : memref<2x1x2x4x8xf32, #tpu.memory_space<vmem>>, vector<1x1x1x4x8xf32>,
    %c1_55 = arith.constant 1 : index
    %c0_56 = arith.constant 0 : index
    %c0_57 = arith.constant 0 : index
    %c0_58 = arith.constant 0 : index
    %c0_59 = arith.constant 0 : index
    %175 = vector.load %arg1[%c1_55, %c0_56, %c0_57, %c0_58, %c0_59] : memref<2x1x2x8x4xf32, #tpu.memory_space<vmem>>, vector<1x1x1x8x4xf32>
    %176 = vector.shape_cast %175 : vector<1x1x1x8x4xf32> to vector<8x4xf32>
    %c1_60 = arith.constant 1 : index
    %c0_61 = arith.constant 0 : index
    %c1_62 = arith.constant 1 : index
    %c0_63 = arith.constant 0 : index
    %c0_64 = arith.constant 0 : index
    %177 = vector.load %arg1[%c1_60, %c0_61, %c1_62, %c0_63, %c0_64] : memref<2x1x2x8x4xf32, #tpu.memory_space<vmem>>, vector<1x1x1x8x4xf32>
    %178 = vector.shape_cast %177 : vector<1x1x1x8x4xf32> to vector<8x4xf32>
    %c1_65 = arith.constant 1 : index
    %c0_66 = arith.constant 0 : index
    %c0_67 = arith.constant 0 : index
    %c0_68 = arith.constant 0 : index
    %c0_69 = arith.constant 0 : index
    %179 = vector.load %arg2[%c1_65, %c0_66, %c0_67, %c0_68, %c0_69] : memref<2x1x2x4x8xf32, #tpu.memory_space<vmem>>, vector<1x1x1x4x8xf32>
    %180 = vector.shape_cast %179 : vector<1x1x1x4x8xf32> to vector<4x8xf32>
    %c1_70 = arith.constant 1 : index
    %c0_71 = arith.constant 0 : index
    %c1_72 = arith.constant 1 : index
    %c0_73 = arith.constant 0 : index
    %c0_74 = arith.constant 0 : index
    %181 = vector.load %arg2[%c1_70, %c0_71, %c1_72, %c0_73, %c0_74] : memref<2x1x2x4x8xf32, #tpu.memory_space<vmem>>, vector<1x1x1x4x8xf32>
    %182 = vector.shape_cast %181 : vector<1x1x1x4x8xf32> to vector<4x8xf32>
    %cst_75 = arith.constant dense<0.000000e+00> : vector<8x8xf32>
    %183 = tpu.matmul %176, %180, %cst_75 {dimension_numbers = #tpu.dot_dimension_numbers<[1], [0], [0], [1], [0, 0, 1, 1], [], []>} : vector<8x4xf32>, vector<4x8xf32>, vector<8x8xf32> -> vector<8x8xf32>
    %cst_76 = arith.constant dense<0.000000e+00> : vector<8x8xf32>
    %184 = tpu.matmul %178, %182, %cst_76 {dimension_numbers = #tpu.dot_dimension_numbers<[1], [0], [0], [1], [0, 0, 1, 1], [], []>} : vector<8x4xf32>, vector<4x8xf32>, vector<8x8xf32> -> vector<8x8xf32>
    %185 = arith.subf %183, %184 : vector<8x8xf32>
    %cst_77 = arith.constant dense<0.000000e+00> : vector<8x8xf32>
    %186 = tpu.matmul %176, %182, %cst_77 {dimension_numbers = #tpu.dot_dimension_numbers<[1], [0], [0], [1], [0, 0, 1, 1], [], []>} : vector<8x4xf32>, vector<4x8xf32>, vector<8x8xf32> -> vector<8x8xf32>
    %cst_78 = arith.constant dense<0.000000e+00> : vector<8x8xf32>
    %187 = tpu.matmul %178, %180, %cst_78 {dimension_numbers = #tpu.dot_dimension_numbers<[1], [0], [0], [1], [0, 0, 1, 1], [], []>} : vector<8x4xf32>, vector<4x8xf32>, vector<8x8xf32> -> vector<8x8xf32>
    %188 = arith.addf %186, %187 : vector<8x8xf32>
    %cst_79 = arith.constant 2.000000e+00 : f32
    %189 = vector.broadcast %cst_79 : f32 to vector<8x8xf32>
    %190 = arith.mulf %189, %185 : vector<8x8xf32>
    %cst_80 = arith.constant 2.000000e+00 : f32
    %191 = vector.broadcast %cst_80 : f32 to vector<8x8xf32>
    %192 = arith.mulf %191, %188 : vector<8x8xf32>
    %193 = math.absf %190 : vector<8x8xf32>
    %cst_81 = arith.constant 0.000000e+00 : f32
    %194 = vector.broadcast %cst_81 : f32 to vector<8x8xf32>
    %195 = arith.subf %194, %193 : vector<8x8xf32>
    %196 = math.exp %195 : vector<8x8xf32>
    %197 = arith.mulf %196, %196 : vector<8x8xf32>
    %cst_82 = arith.constant 1.000000e+00 : f32
    %198 = vector.broadcast %cst_82 : f32 to vector<8x8xf32>
    %199 = arith.addf %198, %197 : vector<8x8xf32>
    %cst_83 = arith.constant 2.000000e+00 : f32
    %200 = vector.broadcast %cst_83 : f32 to vector<8x8xf32>
    %201 = arith.mulf %200, %196 : vector<8x8xf32>
    %202 = math.cos %192 : vector<8x8xf32>
    %203 = arith.mulf %201, %202 : vector<8x8xf32>
    %204 = arith.addf %199, %203 : vector<8x8xf32>
    %cst_84 = arith.constant 0.000000e+00 : f32
    %205 = vector.broadcast %cst_84 : f32 to vector<8x8xf32>
    %206 = arith.cmpf oge, %190, %205 : vector<8x8xf32>
    %cst_85 = arith.constant 1.000000e+00 : f32
    %cst_86 = arith.constant -1.000000e+00 : f32
    %207 = vector.broadcast %cst_85 : f32 to vector<8x8xf32>
    %208 = vector.broadcast %cst_86 : f32 to vector<8x8xf32>
    %209 = arith.select %206, %207, %208 : vector<8x8xi1>, vector<8x8xf32>
    %cst_87 = arith.constant 1.000000e+00 : f32
    %210 = vector.broadcast %cst_87 : f32 to vector<8x8xf32>
    %211 = arith.subf %210, %197 : vector<8x8xf32>
    %212 = arith.mulf %209, %211 : vector<8x8xf32>
    %cst_88 = arith.constant 2.000000e+00 : f32
    %213 = vector.broadcast %cst_88 : f32 to vector<8x8xf32>
    %214 = arith.mulf %213, %196 : vector<8x8xf32>
    %215 = math.sin %192 : vector<8x8xf32>
    %216 = arith.mulf %214, %215 : vector<8x8xf32>
    %217 = tpu.reciprocal %204 {approx = true} : vector<8x8xf32> -> vector<8x8xf32>
    %218 = arith.mulf %212, %217 : vector<8x8xf32>
    %219 = arith.mulf %216, %217 : vector<8x8xf32>
    %cst_89 = arith.constant dense<0.000000e+00> : vector<4x8xf32>
    %220 = tpu.matmul %180, %218, %cst_89 {dimension_numbers = #tpu.dot_dimension_numbers<[1], [1], [0], [0], [0, 0, 1, 0], [], []>} : vector<4x8xf32>, vector<8x8xf32>, vector<4x8xf32> -> vector<4x8xf32>
    %cst_90 = arith.constant dense<0.000000e+00> : vector<4x8xf32>
    %221 = tpu.matmul %182, %219, %cst_90 {dimension_numbers = #tpu.dot_dimension_numbers<[1], [1], [0], [0], [0, 0, 1, 0], [], []>} : vector<4x8xf32>, vector<8x8xf32>, vector<4x8xf32> -> vector<4x8xf32>
    %222 = arith.subf %220, %221 : vector<4x8xf32>
    %cst_91 = arith.constant dense<0.000000e+00> : vector<4x8xf32>
    %223 = tpu.matmul %180, %219, %cst_91 {dimension_numbers = #tpu.dot_dimension_numbers<[1], [1], [0], [0], [0, 0, 1, 0], [], []>} : vector<4x8xf32>, vector<8x8xf32>, vector<4x8xf32> -> vector<4x8xf32>
    %cst_92 = arith.constant dense<0.000000e+00> : vector<4x8xf32>
    %224 = tpu.matmul %182, %218, %cst_92 {dimension_numbers = #tpu.dot_dimension_numbers<[1], [1], [0], [0], [0, 0, 1, 0], [], []>} : vector<4x8xf32>, vector<8x8xf32>, vector<4x8xf32> -> vector<4x8xf32>
    %225 = arith.addf %223, %224 : vector<4x8xf32>
    %226 = vector.extract_strided_slice %222 {offsets = [0, 0], sizes = [1, 8], strides = [1, 1]} : vector<4x8xf32> to vector<1x8xf32>
    %227 = vector.shape_cast %226 : vector<1x8xf32> to vector<8xf32>
    %228 = vector.extract_strided_slice %1 {offsets = [0, 0, 0], sizes = [1, 4, 8], strides = [1, 1, 1]} : vector<4x4x8xf32> to vector<1x4x8xf32>
    %229 = vector.shape_cast %228 : vector<1x4x8xf32> to vector<4x8xf32>
    %230 = vector.shape_cast %227 : vector<8xf32> to vector<1x8xf32>
    %231 = vector.broadcast %230 : vector<1x8xf32> to vector<4x8xf32>
    %232 = arith.mulf %231, %229 : vector<4x8xf32>
    %233 = vector.extract_strided_slice %225 {offsets = [0, 0], sizes = [1, 8], strides = [1, 1]} : vector<4x8xf32> to vector<1x8xf32>
    %234 = vector.shape_cast %233 : vector<1x8xf32> to vector<8xf32>
    %235 = vector.extract_strided_slice %3 {offsets = [0, 0, 0], sizes = [1, 4, 8], strides = [1, 1, 1]} : vector<4x4x8xf32> to vector<1x4x8xf32>
    %236 = vector.shape_cast %235 : vector<1x4x8xf32> to vector<4x8xf32>
    %237 = vector.shape_cast %234 : vector<8xf32> to vector<1x8xf32>
    %238 = vector.broadcast %237 : vector<1x8xf32> to vector<4x8xf32>
    %239 = arith.mulf %238, %236 : vector<4x8xf32>
    %240 = arith.subf %232, %239 : vector<4x8xf32>
    %241 = vector.extract_strided_slice %222 {offsets = [0, 0], sizes = [1, 8], strides = [1, 1]} : vector<4x8xf32> to vector<1x8xf32>
    %242 = vector.shape_cast %241 : vector<1x8xf32> to vector<8xf32>
    %243 = vector.extract_strided_slice %3 {offsets = [0, 0, 0], sizes = [1, 4, 8], strides = [1, 1, 1]} : vector<4x4x8xf32> to vector<1x4x8xf32>
    %244 = vector.shape_cast %243 : vector<1x4x8xf32> to vector<4x8xf32>
    %245 = vector.shape_cast %242 : vector<8xf32> to vector<1x8xf32>
    %246 = vector.broadcast %245 : vector<1x8xf32> to vector<4x8xf32>
    %247 = arith.mulf %246, %244 : vector<4x8xf32>
    %248 = vector.extract_strided_slice %225 {offsets = [0, 0], sizes = [1, 8], strides = [1, 1]} : vector<4x8xf32> to vector<1x8xf32>
    %249 = vector.shape_cast %248 : vector<1x8xf32> to vector<8xf32>
    %250 = vector.extract_strided_slice %1 {offsets = [0, 0, 0], sizes = [1, 4, 8], strides = [1, 1, 1]} : vector<4x4x8xf32> to vector<1x4x8xf32>
    %251 = vector.shape_cast %250 : vector<1x4x8xf32> to vector<4x8xf32>
    %252 = vector.shape_cast %249 : vector<8xf32> to vector<1x8xf32>
    %253 = vector.broadcast %252 : vector<1x8xf32> to vector<4x8xf32>
    %254 = arith.mulf %253, %251 : vector<4x8xf32>
    %255 = arith.addf %247, %254 : vector<4x8xf32>
    %256 = vector.extract_strided_slice %222 {offsets = [1, 0], sizes = [1, 8], strides = [1, 1]} : vector<4x8xf32> to vector<1x8xf32>
    %257 = vector.shape_cast %256 : vector<1x8xf32> to vector<8xf32>
    %258 = vector.extract_strided_slice %225 {offsets = [1, 0], sizes = [1, 8], strides = [1, 1]} : vector<4x8xf32> to vector<1x8xf32>
    %259 = vector.shape_cast %258 : vector<1x8xf32> to vector<8xf32>
    %260 = vector.extract_strided_slice %1 {offsets = [1, 0, 0], sizes = [1, 4, 8], strides = [1, 1, 1]} : vector<4x4x8xf32> to vector<1x4x8xf32>
    %261 = vector.shape_cast %260 : vector<1x4x8xf32> to vector<4x8xf32>
    %262 = vector.shape_cast %257 : vector<8xf32> to vector<1x8xf32>
    %263 = vector.broadcast %262 : vector<1x8xf32> to vector<4x8xf32>
    %264 = arith.mulf %263, %261 : vector<4x8xf32>
    %265 = arith.addf %240, %264 : vector<4x8xf32>
    %266 = vector.extract_strided_slice %3 {offsets = [1, 0, 0], sizes = [1, 4, 8], strides = [1, 1, 1]} : vector<4x4x8xf32> to vector<1x4x8xf32>
    %267 = vector.shape_cast %266 : vector<1x4x8xf32> to vector<4x8xf32>
    %268 = vector.shape_cast %259 : vector<8xf32> to vector<1x8xf32>
    %269 = vector.broadcast %268 : vector<1x8xf32> to vector<4x8xf32>
    %270 = arith.mulf %269, %267 : vector<4x8xf32>
    %271 = arith.subf %265, %270 : vector<4x8xf32>
    %272 = vector.extract_strided_slice %3 {offsets = [1, 0, 0], sizes = [1, 4, 8], strides = [1, 1, 1]} : vector<4x4x8xf32> to vector<1x4x8xf32>
    %273 = vector.shape_cast %272 : vector<1x4x8xf32> to vector<4x8xf32>
    %274 = vector.shape_cast %257 : vector<8xf32> to vector<1x8xf32>
    %275 = vector.broadcast %274 : vector<1x8xf32> to vector<4x8xf32>
    %276 = arith.mulf %275, %273 : vector<4x8xf32>
    %277 = arith.addf %255, %276 : vector<4x8xf32>
    %278 = vector.extract_strided_slice %1 {offsets = [1, 0, 0], sizes = [1, 4, 8], strides = [1, 1, 1]} : vector<4x4x8xf32> to vector<1x4x8xf32>
    %279 = vector.shape_cast %278 : vector<1x4x8xf32> to vector<4x8xf32>
    %280 = vector.shape_cast %259 : vector<8xf32> to vector<1x8xf32>
    %281 = vector.broadcast %280 : vector<1x8xf32> to vector<4x8xf32>
    %282 = arith.mulf %281, %279 : vector<4x8xf32>
    %283 = arith.addf %277, %282 : vector<4x8xf32>
    %284 = vector.extract_strided_slice %222 {offsets = [2, 0], sizes = [1, 8], strides = [1, 1]} : vector<4x8xf32> to vector<1x8xf32>
    %285 = vector.shape_cast %284 : vector<1x8xf32> to vector<8xf32>
    %286 = vector.extract_strided_slice %225 {offsets = [2, 0], sizes = [1, 8], strides = [1, 1]} : vector<4x8xf32> to vector<1x8xf32>
    %287 = vector.shape_cast %286 : vector<1x8xf32> to vector<8xf32>
    %288 = vector.extract_strided_slice %1 {offsets = [2, 0, 0], sizes = [1, 4, 8], strides = [1, 1, 1]} : vector<4x4x8xf32> to vector<1x4x8xf32>
    %289 = vector.shape_cast %288 : vector<1x4x8xf32> to vector<4x8xf32>
    %290 = vector.shape_cast %285 : vector<8xf32> to vector<1x8xf32>
    %291 = vector.broadcast %290 : vector<1x8xf32> to vector<4x8xf32>
    %292 = arith.mulf %291, %289 : vector<4x8xf32>
    %293 = arith.addf %271, %292 : vector<4x8xf32>
    %294 = vector.extract_strided_slice %3 {offsets = [2, 0, 0], sizes = [1, 4, 8], strides = [1, 1, 1]} : vector<4x4x8xf32> to vector<1x4x8xf32>
    %295 = vector.shape_cast %294 : vector<1x4x8xf32> to vector<4x8xf32>
    %296 = vector.shape_cast %287 : vector<8xf32> to vector<1x8xf32>
    %297 = vector.broadcast %296 : vector<1x8xf32> to vector<4x8xf32>
    %298 = arith.mulf %297, %295 : vector<4x8xf32>
    %299 = arith.subf %293, %298 : vector<4x8xf32>
    %300 = vector.extract_strided_slice %3 {offsets = [2, 0, 0], sizes = [1, 4, 8], strides = [1, 1, 1]} : vector<4x4x8xf32> to vector<1x4x8xf32>
    %301 = vector.shape_cast %300 : vector<1x4x8xf32> to vector<4x8xf32>
    %302 = vector.shape_cast %285 : vector<8xf32> to vector<1x8xf32>
    %303 = vector.broadcast %302 : vector<1x8xf32> to vector<4x8xf32>
    %304 = arith.mulf %303, %301 : vector<4x8xf32>
    %305 = arith.addf %283, %304 : vector<4x8xf32>
    %306 = vector.extract_strided_slice %1 {offsets = [2, 0, 0], sizes = [1, 4, 8], strides = [1, 1, 1]} : vector<4x4x8xf32> to vector<1x4x8xf32>
    %307 = vector.shape_cast %306 : vector<1x4x8xf32> to vector<4x8xf32>
    %308 = vector.shape_cast %287 : vector<8xf32> to vector<1x8xf32>
    %309 = vector.broadcast %308 : vector<1x8xf32> to vector<4x8xf32>
    %310 = arith.mulf %309, %307 : vector<4x8xf32>
    %311 = arith.addf %305, %310 : vector<4x8xf32>
    %312 = vector.extract_strided_slice %222 {offsets = [3, 0], sizes = [1, 8], strides = [1, 1]} : vector<4x8xf32> to vector<1x8xf32>
    %313 = vector.shape_cast %312 : vector<1x8xf32> to vector<8xf32>
    %314 = vector.extract_strided_slice %225 {offsets = [3, 0], sizes = [1, 8], strides = [1, 1]} : vector<4x8xf32> to vector<1x8xf32>
    %315 = vector.shape_cast %314 : vector<1x8xf32> to vector<8xf32>
    %316 = vector.extract_strided_slice %1 {offsets = [3, 0, 0], sizes = [1, 4, 8], strides = [1, 1, 1]} : vector<4x4x8xf32> to vector<1x4x8xf32>
    %317 = vector.shape_cast %316 : vector<1x4x8xf32> to vector<4x8xf32>
    %318 = vector.shape_cast %313 : vector<8xf32> to vector<1x8xf32>
    %319 = vector.broadcast %318 : vector<1x8xf32> to vector<4x8xf32>
    %320 = arith.mulf %319, %317 : vector<4x8xf32>
    %321 = arith.addf %299, %320 : vector<4x8xf32>
    %322 = vector.extract_strided_slice %3 {offsets = [3, 0, 0], sizes = [1, 4, 8], strides = [1, 1, 1]} : vector<4x4x8xf32> to vector<1x4x8xf32>
    %323 = vector.shape_cast %322 : vector<1x4x8xf32> to vector<4x8xf32>
    %324 = vector.shape_cast %315 : vector<8xf32> to vector<1x8xf32>
    %325 = vector.broadcast %324 : vector<1x8xf32> to vector<4x8xf32>
    %326 = arith.mulf %325, %323 : vector<4x8xf32>
    %327 = arith.subf %321, %326 : vector<4x8xf32>
    %328 = vector.extract_strided_slice %3 {offsets = [3, 0, 0], sizes = [1, 4, 8], strides = [1, 1, 1]} : vector<4x4x8xf32> to vector<1x4x8xf32>
    %329 = vector.shape_cast %328 : vector<1x4x8xf32> to vector<4x8xf32>
    %330 = vector.shape_cast %313 : vector<8xf32> to vector<1x8xf32>
    %331 = vector.broadcast %330 : vector<1x8xf32> to vector<4x8xf32>
    %332 = arith.mulf %331, %329 : vector<4x8xf32>
    %333 = arith.addf %311, %332 : vector<4x8xf32>
    %334 = vector.extract_strided_slice %1 {offsets = [3, 0, 0], sizes = [1, 4, 8], strides = [1, 1, 1]} : vector<4x4x8xf32> to vector<1x4x8xf32>
    %335 = vector.shape_cast %334 : vector<1x4x8xf32> to vector<4x8xf32>
    %336 = vector.shape_cast %315 : vector<8xf32> to vector<1x8xf32>
    %337 = vector.broadcast %336 : vector<1x8xf32> to vector<4x8xf32>
    %338 = arith.mulf %337, %335 : vector<4x8xf32>
    %339 = arith.addf %333, %338 : vector<4x8xf32>
    %c1_93 = arith.constant 1 : index
    %c0_94 = arith.constant 0 : index
    %c0_95 = arith.constant 0 : index
    %c0_96 = arith.constant 0 : index
    %c0_97 = arith.constant 0 : index
    %340 = vector.load %arg4[%c1_93, %c0_94, %c0_95, %c0_96, %c0_97] : memref<2x1x2x4x8xf32, #tpu.memory_space<vmem>>, vector<1x1x1x4x8xf32>
    %341 = vector.shape_cast %340 : vector<1x1x1x4x8xf32> to vector<4x8xf32>
    %342 = vector.shape_cast %327 : vector<4x8xf32> to vector<1x1x1x4x8xf32>
    tpu.vector_store %arg4[%c1_93, %c0_94, %c0_95, %c0_96, %c0_97], %342 {strides = array<i32>} : memref<2x1x2x4x8xf32, #tpu.memory_space<vmem>>, vector<1x1x1x4x8xf32>,
    %c1_98 = arith.constant 1 : index
    %c0_99 = arith.constant 0 : index
    %c1_100 = arith.constant 1 : index
    %c0_101 = arith.constant 0 : index
    %c0_102 = arith.constant 0 : index
    %343 = vector.load %arg4[%c1_98, %c0_99, %c1_100, %c0_101, %c0_102] : memref<2x1x2x4x8xf32, #tpu.memory_space<vmem>>, vector<1x1x1x4x8xf32>
    %344 = vector.shape_cast %343 : vector<1x1x1x4x8xf32> to vector<4x8xf32>
    %345 = vector.shape_cast %339 : vector<4x8xf32> to vector<1x1x1x4x8xf32>
    tpu.vector_store %arg4[%c1_98, %c0_99, %c1_100, %c0_101, %c0_102], %345 {strides = array<i32>} : memref<2x1x2x4x8xf32, #tpu.memory_space<vmem>>, vector<1x1x1x4x8xf32>,
    return
  }
  func.func @transform_0(%arg0: i32) -> (i32, i32, i32, i32, i32) {
    %c0_i32 = arith.constant 0 : i32
    %c0_i32_0 = arith.constant 0 : i32
    %c0_i32_1 = arith.constant 0 : i32
    %c0_i32_2 = arith.constant 0 : i32
    %c0_i32_3 = arith.constant 0 : i32
    return %c0_i32, %arg0, %c0_i32_0, %c0_i32_1, %c0_i32_2 : i32, i32, i32, i32, i32
  }
  func.func @transform_1(%arg0: i32) -> (i32, i32, i32, i32, i32) {
    %c0_i32 = arith.constant 0 : i32
    %c0_i32_0 = arith.constant 0 : i32
    %c0_i32_1 = arith.constant 0 : i32
    %c0_i32_2 = arith.constant 0 : i32
    %c0_i32_3 = arith.constant 0 : i32
    return %c0_i32, %arg0, %c0_i32_0, %c0_i32_1, %c0_i32_2 : i32, i32, i32, i32, i32
  }
  func.func @transform_2(%arg0: i32) -> (i32, i32, i32, i32, i32) {
    %c0_i32 = arith.constant 0 : i32
    %c0_i32_0 = arith.constant 0 : i32
    %c0_i32_1 = arith.constant 0 : i32
    %c0_i32_2 = arith.constant 0 : i32
    %c0_i32_3 = arith.constant 0 : i32
    return %arg0, %c0_i32, %c0_i32_0, %c0_i32_1, %c0_i32_2 : i32, i32, i32, i32, i32
  }
  func.func @transform_3(%arg0: i32) -> (i32, i32, i32, i32, i32) {
    %c0_i32 = arith.constant 0 : i32
    %c0_i32_0 = arith.constant 0 : i32
    %c0_i32_1 = arith.constant 0 : i32
    %c0_i32_2 = arith.constant 0 : i32
    %c0_i32_3 = arith.constant 0 : i32
    return %c0_i32, %arg0, %c0_i32_0, %c0_i32_1, %c0_i32_2 : i32, i32, i32, i32, i32
  }
}

</mosaic_0001>

<llo_original>
// kernel: tpu_custom_call.1
$region0: #{tpu_custom_call.1}
  #allocation0 [shape = 'u32[]', space=smem, size = 0x4, offset = 0x4, fixed_abs, tag = 'smem constant byte address 0x4 - core index']
  #allocation1 [shape = 'u32[144,128]{1,0:T(1,128)}', space=vmem, size = 0x12000, scoped, tag = 'internal scratch']
  #allocation6 [shape = 's32[]', space=sflag, size = 0x4, offset = 0, fixed_abs, tag = 'sflag constant byte address 0x0 - dummy sync flag']
  %s0 = inlined_call_operand.vmem [shape: f32[2,8,2,8,4], index: 0, kind: input, shape index: {}]
  %s1 = inlined_call_operand.vmem [shape: f32[2,8,2,4,8], index: 1, kind: input, shape index: {}]
  %s2 = inlined_call_operand.vmem [shape: f32[8,2,4,4,8], index: 2, kind: input, shape index: {}]
  %s3 = inlined_call_operand.hbm [shape: f32[2,8,2,4,8], index: 3, kind: output, shape index: {}]
  %s4 = sld [smem:[#allocation0]]
  $region124: #{tpu_custom_call.1} parent=0
    _
  %s6 = ssub.s32 1, %s4
  %s7 = scalar_select 0, %s6, %s4
  $region1: #{tpu_custom_call.1} parent=0
    #allocation2 [shape = 'u8[32768]{0}', space=vmem, size = 0x8000, scoped, tag = 'input window, operand 0']
    #allocation3 [shape = 'u8[16384]{0}', space=vmem, size = 0x4000, scoped, tag = 'input window, operand 1']
    #allocation4 [shape = 'u8[16384]{0}', space=vmem, size = 0x4000, scoped, tag = 'output window, operand 0']
    #allocation5 [shape = 's32[2]{0}', space=sflag, size = 0x8, scoped, tag = 'scoped memory for tpu_custom_call.1']
    %8 = vsyncpa [#allocation5], 0
    %s9 = scalar_lea.sflag [#allocation5], 1
    %10 = vsyncpa %s9, 0
    loop: start=0, step=1, limit=10
    $region2: #{tpu_custom_call.1} parent=1 // loop_pre_header
      _
    $region3: #{tpu_custom_call.1} parent=1 // loop_header
      %s12 = sphi 0, %s16
      %p13 = scmp.ge.s32.totalorder %s12, 10
      %s22 = sphi 0, %s24
      %s25 = sphi 0, %s22
      %s26 = sphi 0, %s25
      %s42 = sphi 0, %s26
      %s48 = sphi 0, %s50
      %s51 = sphi 0, %s48
      %s52 = sphi 0, %s51
      %s68 = sphi 0, %s52
      %s74 = sphi 0, %s76
      %s77 = sphi 0, %s74
      %s78 = sphi 0, %s77
      %s94 = sphi 0, %s78
      %s100 = sphi 0, %s102
      %s103 = sphi 0, %s100
      %s104 = sphi 0, %s103
      %s120 = sphi 0, %s104
    $region4: #{tpu_custom_call.1} parent=1 // loop_header_branch
      %15 = sbr.rel (%p13) target = $region8
    $region5: #{tpu_custom_call.1} parent=1 // loop_body
      %s17 = ssub.s32 %s12, 1
      %s18 = ssub.s32 %s12, 2
      %s19 = sadd.s32 %s12, 1
      %s20 = ssub.s32 %s12, %s19
      %p21 = scmp.eq.s32.totalorder %s20, 0
      %s23 = sadd.s32 %s22, 1
      %s24 = scalar_select %p21, %s22, %s23
      %p27 = pneg %p21
      %p28 = scmp.eq.s32.totalorder %s12, 7
      %p29 = por %p27, %p28
      %p30 = scmp.ne.s32.totalorder %s22, %s25
      %p31 = scmp.eq.s32.totalorder %s12, 0
      %p32 = por %p30, %p31
      %p33 = scmp.ne.s32.totalorder %s22, %s25
      %p34 = scmp.eq.s32.totalorder %s17, 7
      %p35 = por %p33, %p34
      %p36 = scmp.ne.s32.totalorder %s25, %s26
      %p37 = scmp.eq.s32.totalorder %s17, 0
      %p38 = por %p36, %p37
      %p39 = scmp.ne.s32.totalorder %s25, %s26
      %p40 = scmp.eq.s32.totalorder %s18, 7
      %p41 = por %p39, %p40
      %p43 = scmp.ne.s32.totalorder %s26, %s42
      %p44 = scmp.eq.s32.totalorder %s18, 0
      %p45 = por %p43, %p44
      %s46 = ssub.s32 %s12, %s19
      %p47 = scmp.eq.s32.totalorder %s46, 0
      %s49 = sadd.s32 %s48, 1
      %s50 = scalar_select %p47, %s48, %s49
      %p53 = pneg %p47
      %p54 = scmp.eq.s32.totalorder %s12, 7
      %p55 = por %p53, %p54
      %p56 = scmp.ne.s32.totalorder %s48, %s51
      %p57 = scmp.eq.s32.totalorder %s12, 0
      %p58 = por %p56, %p57
      %p59 = scmp.ne.s32.totalorder %s48, %s51
      %p60 = scmp.eq.s32.totalorder %s17, 7
      %p61 = por %p59, %p60
      %p62 = scmp.ne.s32.totalorder %s51, %s52
      %p63 = scmp.eq.s32.totalorder %s17, 0
      %p64 = por %p62, %p63
      %p65 = scmp.ne.s32.totalorder %s51, %s52
      %p66 = scmp.eq.s32.totalorder %s18, 7
      %p67 = por %p65, %p66
      %p69 = scmp.ne.s32.totalorder %s52, %s68
      %p70 = scmp.eq.s32.totalorder %s18, 0
      %p71 = por %p69, %p70
      %s72 = ssub.s32 %s12, %s19
      %p73 = scmp.eq.s32.totalorder %s72, 0
      %s75 = sadd.s32 %s74, 1
      %s76 = scalar_select %p73, %s74, %s75
      %p79 = pneg %p73
      %p80 = scmp.eq.s32.totalorder %s12, 7
      %p81 = por %p79, %p80
      %p82 = scmp.ne.s32.totalorder %s74, %s77
      %p83 = scmp.eq.s32.totalorder %s12, 0
      %p84 = por %p82, %p83
      %p85 = scmp.ne.s32.totalorder %s74, %s77
      %p86 = scmp.eq.s32.totalorder %s17, 7
      %p87 = por %p85, %p86
      %p88 = scmp.ne.s32.totalorder %s77, %s78
      %p89 = scmp.eq.s32.totalorder %s17, 0
      %p90 = por %p88, %p89
      %p91 = scmp.ne.s32.totalorder %s77, %s78
      %p92 = scmp.eq.s32.totalorder %s18, 7
      %p93 = por %p91, %p92
      %p95 = scmp.ne.s32.totalorder %s78, %s94
      %p96 = scmp.eq.s32.totalorder %s18, 0
      %p97 = por %p95, %p96
      %s98 = ssub.s32 %s12, %s19
      %p99 = scmp.eq.s32.totalorder %s98, 0
      %s101 = sadd.s32 %s100, 1
      %s102 = scalar_select %p99, %s100, %s101
      %p105 = pneg %p99
      %p106 = scmp.eq.s32.totalorder %s12, 7
      %p107 = por %p105, %p106
      %p108 = scmp.ne.s32.totalorder %s100, %s103
      %p109 = scmp.eq.s32.totalorder %s12, 0
      %p110 = por %p108, %p109
      %p111 = scmp.ne.s32.totalorder %s100, %s103
      %p112 = scmp.eq.s32.totalorder %s17, 7
      %p113 = por %p111, %p112
      %p114 = scmp.ne.s32.totalorder %s103, %s104
      %p115 = scmp.eq.s32.totalorder %s17, 0
      %p116 = por %p114, %p115
      %p117 = scmp.ne.s32.totalorder %s103, %s104
      %p118 = scmp.eq.s32.totalorder %s18, 7
      %p119 = por %p117, %p118
      %p121 = scmp.ne.s32.totalorder %s104, %s120
      %p122 = scmp.eq.s32.totalorder %s18, 0
      %p123 = por %p121, %p122
      %p124 = scmp.le.s32.totalorder 1, %s12
      %p125 = scmp.lt.s32.totalorder %s12, 9
      %p126 = pnand %p124, %p125
      %p127 = pneg %p126
      // Predicated region
      $region9: #{tpu_custom_call.1} parent=5 // pred_check
        _
      $region10: #{tpu_custom_call.1} parent=5 // pred_check_branch
        %129 = sbr.rel (%p126) target = $region12
      $region11: #{tpu_custom_call.1} parent=5 // pred_region
        %s130 = ssub.s32 %s12, 1
      $region12: #{tpu_custom_call.1} parent=5 // pred_fallthru
        _
      %p131 = scmp.lt.s32.totalorder %s12, 8
      // Predicated region
      $region13: #{tpu_custom_call.1} parent=5 // pred_check
        %p132 = pneg %p131
      $region14: #{tpu_custom_call.1} parent=5 // pred_check_branch
        %134 = sbr.rel (%p132) target = $region16
      $region15: #{tpu_custom_call.1} parent=5 // pred_region
        // Predicated region
        $region17: #{tpu_custom_call.1} parent=15 // pred_check
          %p135 = pneg %p32
        $region18: #{tpu_custom_call.1} parent=15 // pred_check_branch
          %137 = sbr.rel (%p135) target = $region20
        $region19: #{tpu_custom_call.1} parent=15 // pred_region
          %s138 = sand.u32 %s22, 1
          %s139 = sand.u32 %s22, 1
          %s140 = smul.addr %s139, 32
          %s141 = scalar_lea.vmem [#allocation2], %s140
          %s142 = smul.addr %s12, 2
          %s143 = smul.addr %s142, 8
          %s144 = scalar_lea.vmem %s0, %s143
          // Predicated region
          $region21: #{tpu_custom_call.1} parent=19 // pred_check
            _
          $region22: #{tpu_custom_call.1} parent=19 // pred_check_branch
            %146 = sbr.rel (0) target = $region24
          $region23: #{tpu_custom_call.1} parent=19 // pred_region
            // Predicated region
            $region25: #{tpu_custom_call.1} parent=23 // pred_check
              _
            $region26: #{tpu_custom_call.1} parent=23 // pred_check_branch
              %148 = sbr.rel (0) target = $region28
            $region27: #{tpu_custom_call.1} parent=23 // pred_region
              // Predicated region
              $region40: #{tpu_custom_call.1} parent=27 // pred_check
                _
              $region41: #{tpu_custom_call.1} parent=27 // pred_check_branch
                %170 = sbr.rel (0) target = $region43
              $region42: #{tpu_custom_call.1} parent=27 // pred_region
                loop: start=0, step=1, limit=1
                $region44: #{tpu_custom_call.1} parent=42 // loop_pre_header
                  _
                $region45: #{tpu_custom_call.1} parent=42 // loop_header
                  %s172 = sphi 0, %s176
                  %p173 = scmp.ge.s32.totalorder %s172, 1
                  %s177 = sphi %s144, %s144
                  %s178 = sphi %s141, %s141
                $region46: #{tpu_custom_call.1} parent=42 // loop_header_branch
                  %175 = sbr.rel (%p173) target = $region50
                $region47: #{tpu_custom_call.1} parent=42 // loop_body
                  %v179 = vld [vmem:[%s177] sm:$0xff]
                  %180 = vst [vmem:[%s178] sm:$0xff] %v179
                  %v181 = vld [vmem:[%s177 + $0x8] sm:$0xff]
                  %182 = vst [vmem:[%s178 + $0x8] sm:$0xff] %v181
                  %v183 = vld [vmem:[%s177 + $0x80] sm:$0xff]
                  %184 = vst [vmem:[%s178 + $0x10] sm:$0xff] %v183
                  %v185 = vld [vmem:[%s177 + $0x88] sm:$0xff]
                  %186 = vst [vmem:[%s178 + $0x18] sm:$0xff] %v185
                $region48: #{tpu_custom_call.1} parent=42 // loop_footer
                  %s176 = sadd.s32 1, %s172
                $region49: #{tpu_custom_call.1} parent=42 // loop_footer_branch
                  %171 = sbr.rel target = $region45
                $region50: #{tpu_custom_call.1} parent=42 // loop_exit
                  _
              $region43: #{tpu_custom_call.1} parent=27 // pred_fallthru
                _
              // Predicated region
              $region51: #{tpu_custom_call.1} parent=27 // pred_check
                _
              $region52: #{tpu_custom_call.1} parent=27 // pred_check_branch
                %188 = sbr.rel target = $region54
              $region53: #{tpu_custom_call.1} parent=27 // pred_region
                _
              $region54: #{tpu_custom_call.1} parent=27 // pred_fallthru
                _
            $region28: #{tpu_custom_call.1} parent=23 // pred_fallthru
              _
            // Predicated region
            $region29: #{tpu_custom_call.1} parent=23 // pred_check
              _
            $region30: #{tpu_custom_call.1} parent=23 // pred_check_branch
              %150 = sbr.rel target = $region32
            $region31: #{tpu_custom_call.1} parent=23 // pred_region
              %s152 = ssub.s32 256, 1
              loop: start=0, step=1, limit=1
              $region33: #{tpu_custom_call.1} parent=31 // loop_pre_header
                _
              $region34: #{tpu_custom_call.1} parent=31 // loop_header
                %s154 = sphi 0, %s158
                %p155 = scmp.ge.s32.totalorder %s154, 1
                %s159 = sphi %s144, %s144
                %s160 = sphi %s141, %s141
              $region35: #{tpu_custom_call.1} parent=31 // loop_header_branch
                %157 = sbr.rel (%p155) target = $region39
              $region36: #{tpu_custom_call.1} parent=31 // loop_body
                %v161 = vld [vmem:[%s159] sm:%s152]
                %162 = vst [vmem:[%s160] sm:%s152] %v161
                %v163 = vld [vmem:[%s159 + $0x8] sm:%s152]
                %164 = vst [vmem:[%s160 + $0x8] sm:%s152] %v163
                %v165 = vld [vmem:[%s159 + $0x80] sm:%s152]
                %166 = vst [vmem:[%s160 + $0x10] sm:%s152] %v165
                %v167 = vld [vmem:[%s159 + $0x88] sm:%s152]
                %168 = vst [vmem:[%s160 + $0x18] sm:%s152] %v167
              $region37: #{tpu_custom_call.1} parent=31 // loop_footer
                %s158 = sadd.s32 1, %s154
              $region38: #{tpu_custom_call.1} parent=31 // loop_footer_branch
                %153 = sbr.rel target = $region34
              $region39: #{tpu_custom_call.1} parent=31 // loop_exit
                _
            $region32: #{tpu_custom_call.1} parent=23 // pred_fallthru
              _
          $region24: #{tpu_custom_call.1} parent=19 // pred_fallthru
            _
          %189 = vnop
        $region20: #{tpu_custom_call.1} parent=15 // pred_fallthru
          _
        // Predicated region
        $region55: #{tpu_custom_call.1} parent=15 // pred_check
          %p190 = pneg %p58
        $region56: #{tpu_custom_call.1} parent=15 // pred_check_branch
          %192 = sbr.rel (%p190) target = $region58
        $region57: #{tpu_custom_call.1} parent=15 // pred_region
          %s193 = sand.u32 %s48, 1
          %s194 = sand.u32 %s48, 1
          %s195 = smul.addr %s194, 16
          %s196 = scalar_lea.vmem [#allocation3], %s195
          %s197 = smul.addr %s12, 2
          %s198 = smul.addr %s197, 4
          %s199 = scalar_lea.vmem %s1, %s198
          // Predicated region
          $region59: #{tpu_custom_call.1} parent=57 // pred_check
            _
          $region60: #{tpu_custom_call.1} parent=57 // pred_check_branch
            %201 = sbr.rel (0) target = $region62
          $region61: #{tpu_custom_call.1} parent=57 // pred_region
            // Predicated region
            $region63: #{tpu_custom_call.1} parent=61 // pred_check
              _
            $region64: #{tpu_custom_call.1} parent=61 // pred_check_branch
              %203 = sbr.rel target = $region66
            $region65: #{tpu_custom_call.1} parent=61 // pred_region
              // Predicated region
              $region78: #{tpu_custom_call.1} parent=65 // pred_check
                _
              $region79: #{tpu_custom_call.1} parent=65 // pred_check_branch
                %225 = sbr.rel (0) target = $region81
              $region80: #{tpu_custom_call.1} parent=65 // pred_region
                loop: start=0, step=1, limit=1
                $region82: #{tpu_custom_call.1} parent=80 // loop_pre_header
                  _
                $region83: #{tpu_custom_call.1} parent=80 // loop_header
                  %s227 = sphi 0, %s231
                  %p228 = scmp.ge.s32.totalorder %s227, 1
                  %s232 = sphi %s199, %s199
                  %s233 = sphi %s196, %s196
                $region84: #{tpu_custom_call.1} parent=80 // loop_header_branch
                  %230 = sbr.rel (%p228) target = $region88
                $region85: #{tpu_custom_call.1} parent=80 // loop_body
                  _
                $region86: #{tpu_custom_call.1} parent=80 // loop_footer
                  %s231 = sadd.s32 1, %s227
                $region87: #{tpu_custom_call.1} parent=80 // loop_footer_branch
                  %226 = sbr.rel target = $region83
                $region88: #{tpu_custom_call.1} parent=80 // loop_exit
                  _
                %s235 = ssub.s32 16, 1
                loop: start=0, step=1, limit=1
                $region89: #{tpu_custom_call.1} parent=80 // loop_pre_header
                  _
                $region90: #{tpu_custom_call.1} parent=80 // loop_header
                  %s237 = sphi 0, %s241
                  %p238 = scmp.ge.s32.totalorder %s237, 1
                  %s242 = sphi %s199, %s199
                  %s243 = sphi %s196, %s196
                $region91: #{tpu_custom_call.1} parent=80 // loop_header_branch
                  %240 = sbr.rel (%p238) target = $region95
                $region92: #{tpu_custom_call.1} parent=80 // loop_body
                  %v244 = vld [vmem:[%s242] sm:%s235]
                  %245 = vst [vmem:[%s243] sm:%s235] %v244
                  %v246 = vld [vmem:[%s242 + $0x4] sm:%s235]
                  %247 = vst [vmem:[%s243 + $0x4] sm:%s235] %v246
                  %v248 = vld [vmem:[%s242 + $0x40] sm:%s235]
                  %249 = vst [vmem:[%s243 + $0x8] sm:%s235] %v248
                  %v250 = vld [vmem:[%s242 + $0x44] sm:%s235]
                  %251 = vst [vmem:[%s243 + $0xc] sm:%s235] %v250
                $region93: #{tpu_custom_call.1} parent=80 // loop_footer
                  %s241 = sadd.s32 1, %s237
                $region94: #{tpu_custom_call.1} parent=80 // loop_footer_branch
                  %236 = sbr.rel target = $region90
                $region95: #{tpu_custom_call.1} parent=80 // loop_exit
                  _
              $region81: #{tpu_custom_call.1} parent=65 // pred_fallthru
                _
            $region66: #{tpu_custom_call.1} parent=61 // pred_fallthru
              _
            // Predicated region
            $region67: #{tpu_custom_call.1} parent=61 // pred_check
              _
            $region68: #{tpu_custom_call.1} parent=61 // pred_check_branch
              %205 = sbr.rel (0) target = $region70
            $region69: #{tpu_custom_call.1} parent=61 // pred_region
              %s207 = ssub.s32 16, 1
              loop: start=0, step=1, limit=1
              $region71: #{tpu_custom_call.1} parent=69 // loop_pre_header
                _
              $region72: #{tpu_custom_call.1} parent=69 // loop_header
                %s209 = sphi 0, %s213
                %p210 = scmp.ge.s32.totalorder %s209, 1
                %s214 = sphi %s199, %s199
                %s215 = sphi %s196, %s196
              $region73: #{tpu_custom_call.1} parent=69 // loop_header_branch
                %212 = sbr.rel (%p210) target = $region77
              $region74: #{tpu_custom_call.1} parent=69 // loop_body
                %v216 = vld [vmem:[%s214] sm:%s207]
                %217 = vst [vmem:[%s215] sm:%s207] %v216
                %v218 = vld [vmem:[%s214 + $0x4] sm:%s207]
                %219 = vst [vmem:[%s215 + $0x4] sm:%s207] %v218
                %v220 = vld [vmem:[%s214 + $0x40] sm:%s207]
                %221 = vst [vmem:[%s215 + $0x8] sm:%s207] %v220
                %v222 = vld [vmem:[%s214 + $0x44] sm:%s207]
                %223 = vst [vmem:[%s215 + $0xc] sm:%s207] %v222
              $region75: #{tpu_custom_call.1} parent=69 // loop_footer
                %s213 = sadd.s32 1, %s209
              $region76: #{tpu_custom_call.1} parent=69 // loop_footer_branch
                %208 = sbr.rel target = $region72
              $region77: #{tpu_custom_call.1} parent=69 // loop_exit
                _
            $region70: #{tpu_custom_call.1} parent=61 // pred_fallthru
              _
          $region62: #{tpu_custom_call.1} parent=57 // pred_fallthru
            _
          %252 = vnop
        $region58: #{tpu_custom_call.1} parent=15 // pred_fallthru
          _
        // Predicated region
        $region96: #{tpu_custom_call.1} parent=15 // pred_check
          %p253 = pneg %p84
        $region97: #{tpu_custom_call.1} parent=15 // pred_check_branch
          %255 = sbr.rel (%p253) target = $region99
        $region98: #{tpu_custom_call.1} parent=15 // pred_region
          %p256 = scmp.lt.s32.totalorder %s12, 7
          %s257 = scalar_select %p256, %s12, 7
          %s258 = smul.addr %s257, 8
          %s259 = smul.addr %s258, 4
          %s260 = scalar_lea.vmem %s2, %s259
        $region99: #{tpu_custom_call.1} parent=15 // pred_fallthru
          _
      $region16: #{tpu_custom_call.1} parent=5 // pred_fallthru
        _
      %p261 = scmp.le.s32.totalorder 1, %s12
      %p262 = scmp.lt.s32.totalorder %s12, 9
      %p263 = pnand %p261, %p262
      %p264 = pneg %p263
      // Predicated region
      $region100: #{tpu_custom_call.1} parent=5 // pred_check
        _
      $region101: #{tpu_custom_call.1} parent=5 // pred_check_branch
        %266 = sbr.rel (%p263) target = $region103
      $region102: #{tpu_custom_call.1} parent=5 // pred_region
        %s267 = ssub.s32 %s12, 1
        %s268 = sand.u32 %s25, 1
        %s269 = sand.u32 %s25, 1
        %s270 = smul.addr %s269, 32
        %s271 = scalar_lea.vmem [#allocation2], %s270
        // Predicated region
        $region104: #{tpu_custom_call.1} parent=102 // pred_check
          %p272 = pneg %p38
        $region105: #{tpu_custom_call.1} parent=102 // pred_check_branch
          %274 = sbr.rel (%p272) target = $region107
        $region106: #{tpu_custom_call.1} parent=102 // pred_region
          _
        $region107: #{tpu_custom_call.1} parent=102 // pred_fallthru
          _
        %s275 = sand.u32 %s51, 1
        %s276 = sand.u32 %s51, 1
        %s277 = smul.addr %s276, 16
        %s278 = scalar_lea.vmem [#allocation3], %s277
        // Predicated region
        $region108: #{tpu_custom_call.1} parent=102 // pred_check
          %p279 = pneg %p64
        $region109: #{tpu_custom_call.1} parent=102 // pred_check_branch
          %281 = sbr.rel (%p279) target = $region111
        $region110: #{tpu_custom_call.1} parent=102 // pred_region
          _
        $region111: #{tpu_custom_call.1} parent=102 // pred_fallthru
          _
        %s282 = sand.u32 %s25, 1
        %s283 = sand.u32 %s25, 1
        %s284 = smul.addr %s283, 32
        %s285 = scalar_lea.vmem [#allocation2], %s284
        %p286 = pneg %p38
        %p287 = pneg %p35
        %s288 = sand.u32 %s51, 1
        %s289 = sand.u32 %s51, 1
        %s290 = smul.addr %s289, 16
        %s291 = scalar_lea.vmem [#allocation3], %s290
        %p292 = pneg %p64
        %p293 = pneg %p61
        %p294 = scmp.lt.s32.totalorder %s17, 7
        %s295 = scalar_select %p294, %s17, 7
        %s296 = smul.addr %s295, 8
        %s297 = smul.addr %s296, 4
        %s298 = scalar_lea.vmem %s2, %s297
        %p299 = pneg %p90
        %p300 = pneg %p87
        %p301 = pneg %p116
        %p302 = pneg %p113
        %s303 = sand.u32 %s103, 1
        %s304 = scalar_lea.sflag [#allocation5], %s303
        %s305 = sand.u32 %s103, 1
        %s306 = smul.addr %s305, 16
        %s307 = scalar_lea.vmem [#allocation4], %s306
        %p308 = scmp.lt.s32.totalorder %s17, 7
        %s309 = scalar_select %p308, %s17, 7
        %s310 = smul.addr %s309, 8
        %s311 = smul.addr %s310, 4
        %s312 = scalar_lea.vmem %s2, %s311
        %v313 = vld [vmem:[%s312] sm:$0xf]
        %v314 = vld [vmem:[%s312 + $0x4] sm:$0xf]
        %v315 = vld [vmem:[%s312 + $0x8] sm:$0xf]
        %v316 = vld [vmem:[%s312 + $0xc] sm:$0xf]
        %s317 = scalar_lea.vmem %s312, 16
        %v318 = vld [vmem:[%s317] sm:$0xf]
        %v319 = vld [vmem:[%s317 + $0x4] sm:$0xf]
        %v320 = vld [vmem:[%s317 + $0x8] sm:$0xf]
        %v321 = vld [vmem:[%s317 + $0xc] sm:$0xf]
        %v322 = vld [vmem:[%s271] sm:$0xff]
        %s323 = scalar_lea.vmem %s271, 8 [#allocation2]
        %v324 = vld [vmem:[%s323] sm:$0xff]
        %v325 = vld [vmem:[%s278] sm:$0xf]
        %s326 = scalar_lea.vmem %s278, 4 [#allocation3]
        %v327 = vld [vmem:[%s326] sm:$0xf]
        %vm328 = vcmask 31744
        %v330 = vsel %vm328, %v322, 0
        %vm332 = vcmask 1043456
        %v334 = vsel %vm332, %v325, 0
        %336 = vmatprep.subr.mxu0 0.0
        %337 = vmatpush1.msra.mxu0 0.0
        %338 = vmatprep.subr.mxu0 0.0
        %339 = vmatpush1.msra.mxu0 0.0
        %340 = vmatprep.subr.mxu0 0.0
        %341 = vmatpush1.msra.mxu0 0.0
        %342 = vmatprep.subr.mxu0 0.0
        %343 = vmatpush1.msra.mxu0 0.0
        %344 = vmatprep.subr.mxu0 0.0
        %345 = vmatpush1.msra.mxu0 0.0
        %346 = vmatprep.subr.mxu0 0.0
        %347 = vmatpush1.msra.mxu0 0.0
        %348 = vmatprep.subr.mxu0 0.0
        %349 = vmatpush1.msra.mxu0 0.0
        %350 = vmatprep.subr.mxu0 0.0
        %351 = vmatpush1.msra.mxu0 0.0
        %352 = vmatprep.subr.mxu0 0.0
        %353 = vmatpush1.msra.mxu0 0.0
        %354 = vmatprep.subr.mxu0 0.0
        %355 = vmatpush1.msra.mxu0 0.0
        %356 = vmatprep.subr.mxu0 0.0
        %357 = vmatpush1.msra.mxu0 0.0
        %358 = vmatprep.subr.mxu0 0.0
        %359 = vmatpush1.msra.mxu0 0.0
        %360 = vmatprep.subr.mxu0 0.0
        %361 = vmatpush1.msra.mxu0 0.0
        %362 = vmatprep.subr.mxu0 0.0
        %363 = vmatpush1.msra.mxu0 0.0
        %364 = vmatprep.subr.mxu0 0.0
        %365 = vmatpush1.msra.mxu0 0.0
        %366 = vmatprep.subr.mxu0 0.0
        %367 = vmatpush1.msra.mxu0 %v334
        %368 = vmatprep.subr.mxu0 0.0
        %369 = vmatpush2.msra.mxu0 0.0
        %370 = vmatprep.subr.mxu0 0.0
        %371 = vmatpush2.msra.mxu0 0.0
        %372 = vmatprep.subr.mxu0 0.0
        %373 = vmatpush2.msra.mxu0 0.0
        %374 = vmatprep.subr.mxu0 0.0
        %375 = vmatpush2.msra.mxu0 0.0
        %376 = vmatprep.subr.mxu0 0.0
        %377 = vmatpush2.msra.mxu0 0.0
        %378 = vmatprep.subr.mxu0 0.0
        %379 = vmatpush2.msra.mxu0 0.0
        %380 = vmatprep.subr.mxu0 0.0
        %381 = vmatpush2.msra.mxu0 0.0
        %382 = vmatprep.subr.mxu0 0.0
        %383 = vmatpush2.msra.mxu0 0.0
        %384 = vmatprep.subr.mxu0 0.0
        %385 = vmatpush2.msra.mxu0 0.0
        %386 = vmatprep.subr.mxu0 0.0
        %387 = vmatpush2.msra.mxu0 0.0
        %388 = vmatprep.subr.mxu0 0.0
        %389 = vmatpush2.msra.mxu0 0.0
        %390 = vmatprep.subr.mxu0 0.0
        %391 = vmatpush2.msra.mxu0 0.0
        %392 = vmatprep.subr.mxu0 0.0
        %393 = vmatpush2.msra.mxu0 0.0
        %394 = vmatprep.subr.mxu0 0.0
        %395 = vmatpush2.msra.mxu0 0.0
        %396 = vmatprep.subr.mxu0 0.0
        %397 = vmatpush2.msra.mxu0 0.0
        %398 = vmatprep.subr.mxu0 0.0
        %399 = vmatpush2.msra.mxu0 0.0
        %400 = vmatprep.mubr.f32.mxu0 0.0
        %401 = vmatmul.mubr.f32.gmra.mxu0 %v330
        %v402 = vpop.f32.mrf.mxu0
        %v403 = vadd.f32 0.0, %v402
        %v404 = vpop.f32.mrf.mxu0
        %405 = vdwg.mxu0
        %v407 = vsel %vm328, %v324, 0
        %v410 = vsel %vm332, %v327, 0
        %412 = vmatprep.subr.mxu0 0.0
        %413 = vmatpush1.msra.mxu0 0.0
        %414 = vmatprep.subr.mxu0 0.0
        %415 = vmatpush1.msra.mxu0 0.0
        %416 = vmatprep.subr.mxu0 0.0
        %417 = vmatpush1.msra.mxu0 0.0
        %418 = vmatprep.subr.mxu0 0.0
        %419 = vmatpush1.msra.mxu0 0.0
        %420 = vmatprep.subr.mxu0 0.0
        %421 = vmatpush1.msra.mxu0 0.0
        %422 = vmatprep.subr.mxu0 0.0
        %423 = vmatpush1.msra.mxu0 0.0
        %424 = vmatprep.subr.mxu0 0.0
        %425 = vmatpush1.msra.mxu0 0.0
        %426 = vmatprep.subr.mxu0 0.0
        %427 = vmatpush1.msra.mxu0 0.0
        %428 = vmatprep.subr.mxu0 0.0
        %429 = vmatpush1.msra.mxu0 0.0
        %430 = vmatprep.subr.mxu0 0.0
        %431 = vmatpush1.msra.mxu0 0.0
        %432 = vmatprep.subr.mxu0 0.0
        %433 = vmatpush1.msra.mxu0 0.0
        %434 = vmatprep.subr.mxu0 0.0
        %435 = vmatpush1.msra.mxu0 0.0
        %436 = vmatprep.subr.mxu0 0.0
        %437 = vmatpush1.msra.mxu0 0.0
        %438 = vmatprep.subr.mxu0 0.0
        %439 = vmatpush1.msra.mxu0 0.0
        %440 = vmatprep.subr.mxu0 0.0
        %441 = vmatpush1.msra.mxu0 0.0
        %442 = vmatprep.subr.mxu0 0.0
        %443 = vmatpush1.msra.mxu0 %v410
        %444 = vmatprep.subr.mxu0 0.0
        %445 = vmatpush2.msra.mxu0 0.0
        %446 = vmatprep.subr.mxu0 0.0
        %447 = vmatpush2.msra.mxu0 0.0
        %448 = vmatprep.subr.mxu0 0.0
        %449 = vmatpush2.msra.mxu0 0.0
        %450 = vmatprep.subr.mxu0 0.0
        %451 = vmatpush2.msra.mxu0 0.0
        %452 = vmatprep.subr.mxu0 0.0
        %453 = vmatpush2.msra.mxu0 0.0
        %454 = vmatprep.subr.mxu0 0.0
        %455 = vmatpush2.msra.mxu0 0.0
        %456 = vmatprep.subr.mxu0 0.0
        %457 = vmatpush2.msra.mxu0 0.0
        %458 = vmatprep.subr.mxu0 0.0
        %459 = vmatpush2.msra.mxu0 0.0
        %460 = vmatprep.subr.mxu0 0.0
        %461 = vmatpush2.msra.mxu0 0.0
        %462 = vmatprep.subr.mxu0 0.0
        %463 = vmatpush2.msra.mxu0 0.0
        %464 = vmatprep.subr.mxu0 0.0
        %465 = vmatpush2.msra.mxu0 0.0
        %466 = vmatprep.subr.mxu0 0.0
        %467 = vmatpush2.msra.mxu0 0.0
        %468 = vmatprep.subr.mxu0 0.0
        %469 = vmatpush2.msra.mxu0 0.0
        %470 = vmatprep.subr.mxu0 0.0
        %471 = vmatpush2.msra.mxu0 0.0
        %472 = vmatprep.subr.mxu0 0.0
        %473 = vmatpush2.msra.mxu0 0.0
        %474 = vmatprep.subr.mxu0 0.0
        %475 = vmatpush2.msra.mxu0 0.0
        %476 = vmatprep.mubr.f32.mxu0 0.0
        %477 = vmatmul.mubr.f32.gmra.mxu0 %v407
        %v478 = vpop.f32.mrf.mxu0
        %v479 = vadd.f32 0.0, %v478
        %v480 = vpop.f32.mrf.mxu0
        %481 = vdwg.mxu0
        %v482 = vsub.f32 %v403, %v479
        %483 = vmatprep.subr.mxu0 0.0
        %484 = vmatpush1.msra.mxu0 0.0
        %485 = vmatprep.subr.mxu0 0.0
        %486 = vmatpush1.msra.mxu0 0.0
        %487 = vmatprep.subr.mxu0 0.0
        %488 = vmatpush1.msra.mxu0 0.0
        %489 = vmatprep.subr.mxu0 0.0
        %490 = vmatpush1.msra.mxu0 0.0
        %491 = vmatprep.subr.mxu0 0.0
        %492 = vmatpush1.msra.mxu0 0.0
        %493 = vmatprep.subr.mxu0 0.0
        %494 = vmatpush1.msra.mxu0 0.0
        %495 = vmatprep.subr.mxu0 0.0
        %496 = vmatpush1.msra.mxu0 0.0
        %497 = vmatprep.subr.mxu0 0.0
        %498 = vmatpush1.msra.mxu0 0.0
        %499 = vmatprep.subr.mxu0 0.0
        %500 = vmatpush1.msra.mxu0 0.0
        %501 = vmatprep.subr.mxu0 0.0
        %502 = vmatpush1.msra.mxu0 0.0
        %503 = vmatprep.subr.mxu0 0.0
        %504 = vmatpush1.msra.mxu0 0.0
        %505 = vmatprep.subr.mxu0 0.0
        %506 = vmatpush1.msra.mxu0 0.0
        %507 = vmatprep.subr.mxu0 0.0
        %508 = vmatpush1.msra.mxu0 0.0
        %509 = vmatprep.subr.mxu0 0.0
        %510 = vmatpush1.msra.mxu0 0.0
        %511 = vmatprep.subr.mxu0 0.0
        %512 = vmatpush1.msra.mxu0 0.0
        %513 = vmatprep.subr.mxu0 0.0
        %514 = vmatpush1.msra.mxu0 %v334
        %515 = vmatprep.subr.mxu0 0.0
        %516 = vmatpush2.msra.mxu0 0.0
        %517 = vmatprep.subr.mxu0 0.0
        %518 = vmatpush2.msra.mxu0 0.0
        %519 = vmatprep.subr.mxu0 0.0
        %520 = vmatpush2.msra.mxu0 0.0
        %521 = vmatprep.subr.mxu0 0.0
        %522 = vmatpush2.msra.mxu0 0.0
        %523 = vmatprep.subr.mxu0 0.0
        %524 = vmatpush2.msra.mxu0 0.0
        %525 = vmatprep.subr.mxu0 0.0
        %526 = vmatpush2.msra.mxu0 0.0
        %527 = vmatprep.subr.mxu0 0.0
        %528 = vmatpush2.msra.mxu0 0.0
        %529 = vmatprep.subr.mxu0 0.0
        %530 = vmatpush2.msra.mxu0 0.0
        %531 = vmatprep.subr.mxu0 0.0
        %532 = vmatpush2.msra.mxu0 0.0
        %533 = vmatprep.subr.mxu0 0.0
        %534 = vmatpush2.msra.mxu0 0.0
        %535 = vmatprep.subr.mxu0 0.0
        %536 = vmatpush2.msra.mxu0 0.0
        %537 = vmatprep.subr.mxu0 0.0
        %538 = vmatpush2.msra.mxu0 0.0
        %539 = vmatprep.subr.mxu0 0.0
        %540 = vmatpush2.msra.mxu0 0.0
        %541 = vmatprep.subr.mxu0 0.0
        %542 = vmatpush2.msra.mxu0 0.0
        %543 = vmatprep.subr.mxu0 0.0
        %544 = vmatpush2.msra.mxu0 0.0
        %545 = vmatprep.subr.mxu0 0.0
        %546 = vmatpush2.msra.mxu0 0.0
        %547 = vmatprep.mubr.f32.mxu0 0.0
        %548 = vmatmul.mubr.f32.gmra.mxu0 %v407
        %v549 = vpop.f32.mrf.mxu0
        %v550 = vadd.f32 0.0, %v549
        %v551 = vpop.f32.mrf.mxu0
        %552 = vdwg.mxu0
        %553 = vmatprep.subr.mxu0 0.0
        %554 = vmatpush1.msra.mxu0 0.0
        %555 = vmatprep.subr.mxu0 0.0
        %556 = vmatpush1.msra.mxu0 0.0
        %557 = vmatprep.subr.mxu0 0.0
        %558 = vmatpush1.msra.mxu0 0.0
        %559 = vmatprep.subr.mxu0 0.0
        %560 = vmatpush1.msra.mxu0 0.0
        %561 = vmatprep.subr.mxu0 0.0
        %562 = vmatpush1.msra.mxu0 0.0
        %563 = vmatprep.subr.mxu0 0.0
        %564 = vmatpush1.msra.mxu0 0.0
        %565 = vmatprep.subr.mxu0 0.0
        %566 = vmatpush1.msra.mxu0 0.0
        %567 = vmatprep.subr.mxu0 0.0
        %568 = vmatpush1.msra.mxu0 0.0
        %569 = vmatprep.subr.mxu0 0.0
        %570 = vmatpush1.msra.mxu0 0.0
        %571 = vmatprep.subr.mxu0 0.0
        %572 = vmatpush1.msra.mxu0 0.0
        %573 = vmatprep.subr.mxu0 0.0
        %574 = vmatpush1.msra.mxu0 0.0
        %575 = vmatprep.subr.mxu0 0.0
        %576 = vmatpush1.msra.mxu0 0.0
        %577 = vmatprep.subr.mxu0 0.0
        %578 = vmatpush1.msra.mxu0 0.0
        %579 = vmatprep.subr.mxu0 0.0
        %580 = vmatpush1.msra.mxu0 0.0
        %581 = vmatprep.subr.mxu0 0.0
        %582 = vmatpush1.msra.mxu0 0.0
        %583 = vmatprep.subr.mxu0 0.0
        %584 = vmatpush1.msra.mxu0 %v410
        %585 = vmatprep.subr.mxu0 0.0
        %586 = vmatpush2.msra.mxu0 0.0
        %587 = vmatprep.subr.mxu0 0.0
        %588 = vmatpush2.msra.mxu0 0.0
        %589 = vmatprep.subr.mxu0 0.0
        %590 = vmatpush2.msra.mxu0 0.0
        %591 = vmatprep.subr.mxu0 0.0
        %592 = vmatpush2.msra.mxu0 0.0
        %593 = vmatprep.subr.mxu0 0.0
        %594 = vmatpush2.msra.mxu0 0.0
        %595 = vmatprep.subr.mxu0 0.0
        %596 = vmatpush2.msra.mxu0 0.0
        %597 = vmatprep.subr.mxu0 0.0
        %598 = vmatpush2.msra.mxu0 0.0
        %599 = vmatprep.subr.mxu0 0.0
        %600 = vmatpush2.msra.mxu0 0.0
        %601 = vmatprep.subr.mxu0 0.0
        %602 = vmatpush2.msra.mxu0 0.0
        %603 = vmatprep.subr.mxu0 0.0
        %604 = vmatpush2.msra.mxu0 0.0
        %605 = vmatprep.subr.mxu0 0.0
        %606 = vmatpush2.msra.mxu0 0.0
        %607 = vmatprep.subr.mxu0 0.0
        %608 = vmatpush2.msra.mxu0 0.0
        %609 = vmatprep.subr.mxu0 0.0
        %610 = vmatpush2.msra.mxu0 0.0
        %611 = vmatprep.subr.mxu0 0.0
        %612 = vmatpush2.msra.mxu0 0.0
        %613 = vmatprep.subr.mxu0 0.0
        %614 = vmatpush2.msra.mxu0 0.0
        %615 = vmatprep.subr.mxu0 0.0
        %616 = vmatpush2.msra.mxu0 0.0
        %617 = vmatprep.mubr.f32.mxu0 0.0
        %618 = vmatmul.mubr.f32.gmra.mxu0 %v330
        %v619 = vpop.f32.mrf.mxu0
        %v620 = vadd.f32 %v550, %v619
        %v621 = vpop.f32.mrf.mxu0
        %622 = vdwg.mxu0
        %v623 = vmul.f32 %v482, 2.0
        %v624 = vmul.f32 %v620, 2.0
        %v625 = vand.u32 2147483647, %v623
        %v626 = vsub.f32 0.0, %v625
        %v627 = vmul.f32 %v626, 1.442695
        %v628 = vpow.pop %v627
        %v629 = vmul.f32 %v628, %v628
        %v630 = vadd.f32 %v629, 1.0
        %v631 = vmul.f32 %v628, 2.0
        %v632 = vand.u32 2147483647, %v624
        %vm633 = vcmp.le.f32.partialorder %v632, 0.7853982
        %vm634 = vcmp.lt.s32.totalorder %v624, 0
        %v635 = vand.u32 %v624, 2139095040
        %v636 = vshrl.u32 %v635, 23
        %v637 = vsub.s32 %v636, 127
        %v638 = vand.u32 2147483647, %v624
        %v639 = vand.u32 %v638, 8388607
        %v640 = vor.u32 %v639, 8388608
        %v641 = vsub.s32 0, %v640
        %v642 = vadd.s32 %v637, 1
        %vm643 = vcmp.gt.s32.totalorder %v642, 0
        %v644 = vsel %vm643, %v642, 0
        %v645 = vshrl.u32 %v644, 5
        %v646 = vand.u32 %v644, 31
        %v647 = vsub.s32 32, %v646
        %v648 = vshrl.u32 683565275, %v647
        %v649 = vshll.u32 683565275, %v646
        %v650 = vshrl.u32 2475754826, %v647
        %v651 = vor.u32 %v649, %v650
        %v652 = vshll.u32 2475754826, %v646
        %v653 = vshrl.u32 2131351028, %v647
        %v654 = vor.u32 %v652, %v653
        %v655 = vshll.u32 2131351028, %v646
        %v656 = vshrl.u32 2102212464, %v647
        %v657 = vor.u32 %v655, %v656
        %v658 = vshll.u32 2102212464, %v646
        %v659 = vshrl.u32 920167782, %v647
        %v660 = vor.u32 %v658, %v659
        %v661 = vshll.u32 920167782, %v646
        %v662 = vshrl.u32 1326507024, %v647
        %v663 = vor.u32 %v661, %v662
        %vm664 = vcmp.lt.s32.totalorder %v645, 1
        %vm665 = vcmp.lt.s32.totalorder %v645, 2
        %vm666 = vcmp.lt.s32.totalorder %v645, 3
        %vm667 = vcmp.lt.s32.totalorder %v645, 4
        %v668 = vsel %vm664, %v648, %v651
        %v669 = vsel %vm667, %v657, 2102212464
        %v670 = vsel %vm666, %v654, %v669
        %v671 = vsel %vm665, %v668, %v670
        %v672 = vsel %vm664, %v651, %v654
        %v673 = vsel %vm667, %v660, 920167782
        %v674 = vsel %vm666, %v657, %v673
        %v675 = vsel %vm665, %v672, %v674
        %v676 = vsel %vm664, %v654, %v657
        %v677 = vsel %vm667, %v663, 1326507024
        %v678 = vsel %vm666, %v660, %v677
        %v679 = vsel %vm665, %v676, %v678
        %v680 = vshll.u32 %v640, 8
        %v681 = vmul.u32.u64.compose %v680, %v679
        %v682 = vextract.low.u32 %v681
        %v683 = vextract.high.u32 %v681
        %v684 = vmul.u32.u64.compose %v680, %v675
        %v685 = vextract.low.u32 %v684
        %v686 = vextract.high.u32 %v684
        %v687 = vmul.u32 %v680, %v671
        %v688 = vadd.s32 %v683, %v685
        %vm689 = vc.u32 %v683, %v685
        %v690 = vadd.s32 %v686, 1
        %v691 = vsel %vm689, %v690, %v686
        %v692 = vadd.s32 %v687, %v691
        %v693 = vadd.s32 %v692, 536870912
        %v694 = vshrl.u32 %v693, 30
        %v695 = vshll.u32 %v694, 30
        %v696 = vsub.s32 %v692, %v695
        %vm697 = vcmp.lt.s32.totalorder %v696, 0
        %v698 = vsub.s32 0, %v696
        %v699 = vsel %vm697, %v698, %v696
        %v700 = vclz %v699
        %v701 = vsub.s32 %v700, 2
        %vm702 = vcmp.gt.s32.totalorder 0, %v701
        %v703 = vsel %vm702, 0, %v701
        %v704 = vsub.s32 32, %v703
        %v705 = vshll.u32 %v696, %v703
        %v706 = vshrl.u32 %v688, %v704
        %v707 = vor.u32 %v705, %v706
        %v708 = vsub.s32 4294967266, %v703
        %v709 = vadd.s32 %v708, 127
        %v710 = vshll.u32 %v709, 23
        %v711 = vor.u32 4788187, %v710
        %v712 = vand.u32 2147483647, %v711
        %v714 = vcvt.s32.f32 %v707
        %v715 = vmul.f32 %v714, %v712
        %v716 = vxor.u32 %v715, 2147483648
        %v717 = vsel %vm634, %v716, %v715
        %v718 = vsub.s32 4, %v694
        %v719 = vsel %vm634, %v718, %v694
        %v720 = vsel %vm633, %v624, %v717
        %v721 = vsel %vm633, 0, %v719
        %v722 = vcosq.f32.pop %v720
        %v723 = vsinq.f32.pop %v720
        %vm724 = vweird.f32 %v624
        %v725 = vand.u32 %v721, 3
        %vm726 = vcmp.lt.s32.totalorder %v725, 2
        %vm727 = vcmp.eq.s32.totalorder %v725, 0
        %v728 = vxor.u32 %v723, 2147483648
        %v729 = vsel %vm727, %v722, %v728
        %vm730 = vcmp.eq.s32.totalorder %v725, 2
        %v731 = vxor.u32 %v722, 2147483648
        %v732 = vsel %vm730, %v731, %v723
        %v733 = vsel %vm726, %v729, %v732
        %v734 = vsel %vm724, nan, %v733
        %v735 = vmul.f32 %v631, %v734
        %v736 = vadd.f32 %v630, %v735
        %vm737 = vcmp.ge.f32.partialorder %v623, 0.0
        %v738 = vsel %vm737, 1.0, -1.0
        %v739 = vsub.f32 1.0, %v629
        %v740 = vmul.f32 %v738, %v739
        %v741 = vand.u32 2147483647, %v624
        %vm742 = vcmp.le.f32.partialorder %v741, 0.7853982
        %vm743 = vcmp.lt.s32.totalorder %v624, 0
        %v744 = vand.u32 %v624, 2139095040
        %v745 = vshrl.u32 %v744, 23
        %v746 = vsub.s32 %v745, 127
        %v747 = vand.u32 2147483647, %v624
        %v748 = vand.u32 %v747, 8388607
        %v749 = vor.u32 %v748, 8388608
        %v750 = vsub.s32 0, %v749
        %v751 = vadd.s32 %v746, 1
        %vm752 = vcmp.gt.s32.totalorder %v751, 0
        %v753 = vsel %vm752, %v751, 0
        %v754 = vshrl.u32 %v753, 5
        %v755 = vand.u32 %v753, 31
        %v756 = vsub.s32 32, %v755
        %v757 = vshrl.u32 683565275, %v756
        %v758 = vshll.u32 683565275, %v755
        %v759 = vshrl.u32 2475754826, %v756
        %v760 = vor.u32 %v758, %v759
        %v761 = vshll.u32 2475754826, %v755
        %v762 = vshrl.u32 2131351028, %v756
        %v763 = vor.u32 %v761, %v762
        %v764 = vshll.u32 2131351028, %v755
        %v765 = vshrl.u32 2102212464, %v756
        %v766 = vor.u32 %v764, %v765
        %v767 = vshll.u32 2102212464, %v755
        %v768 = vshrl.u32 920167782, %v756
        %v769 = vor.u32 %v767, %v768
        %v770 = vshll.u32 920167782, %v755
        %v771 = vshrl.u32 1326507024, %v756
        %v772 = vor.u32 %v770, %v771
        %vm773 = vcmp.lt.s32.totalorder %v754, 1
        %vm774 = vcmp.lt.s32.totalorder %v754, 2
        %vm775 = vcmp.lt.s32.totalorder %v754, 3
        %vm776 = vcmp.lt.s32.totalorder %v754, 4
        %v777 = vsel %vm773, %v757, %v760
        %v778 = vsel %vm776, %v766, 2102212464
        %v779 = vsel %vm775, %v763, %v778
        %v780 = vsel %vm774, %v777, %v779
        %v781 = vsel %vm773, %v760, %v763
        %v782 = vsel %vm776, %v769, 920167782
        %v783 = vsel %vm775, %v766, %v782
        %v784 = vsel %vm774, %v781, %v783
        %v785 = vsel %vm773, %v763, %v766
        %v786 = vsel %vm776, %v772, 1326507024
        %v787 = vsel %vm775, %v769, %v786
        %v788 = vsel %vm774, %v785, %v787
        %v789 = vshll.u32 %v749, 8
        %v790 = vmul.u32.u64.compose %v789, %v788
        %v791 = vextract.low.u32 %v790
        %v792 = vextract.high.u32 %v790
        %v793 = vmul.u32.u64.compose %v789, %v784
        %v794 = vextract.low.u32 %v793
        %v795 = vextract.high.u32 %v793
        %v796 = vmul.u32 %v789, %v780
        %v797 = vadd.s32 %v792, %v794
        %vm798 = vc.u32 %v792, %v794
        %v799 = vadd.s32 %v795, 1
        %v800 = vsel %vm798, %v799, %v795
        %v801 = vadd.s32 %v796, %v800
        %v802 = vadd.s32 %v801, 536870912
        %v803 = vshrl.u32 %v802, 30
        %v804 = vshll.u32 %v803, 30
        %v805 = vsub.s32 %v801, %v804
        %vm806 = vcmp.lt.s32.totalorder %v805, 0
        %v807 = vsub.s32 0, %v805
        %v808 = vsel %vm806, %v807, %v805
        %v809 = vclz %v808
        %v810 = vsub.s32 %v809, 2
        %vm811 = vcmp.gt.s32.totalorder 0, %v810
        %v812 = vsel %vm811, 0, %v810
        %v813 = vsub.s32 32, %v812
        %v814 = vshll.u32 %v805, %v812
        %v815 = vshrl.u32 %v797, %v813
        %v816 = vor.u32 %v814, %v815
        %v817 = vsub.s32 4294967266, %v812
        %v818 = vadd.s32 %v817, 127
        %v819 = vshll.u32 %v818, 23
        %v820 = vor.u32 4788187, %v819
        %v821 = vand.u32 2147483647, %v820
        %v823 = vcvt.s32.f32 %v816
        %v824 = vmul.f32 %v823, %v821
        %v825 = vxor.u32 %v824, 2147483648
        %v826 = vsel %vm743, %v825, %v824
        %v827 = vsub.s32 4, %v803
        %v828 = vsel %vm743, %v827, %v803
        %v829 = vsel %vm742, %v624, %v826
        %v830 = vsel %vm742, 0, %v828
        %v831 = vcosq.f32.pop %v829
        %v832 = vsinq.f32.pop %v829
        %vm833 = vweird.f32 %v624
        %v834 = vadd.s32 %v830, 3
        %v835 = vand.u32 %v834, 3
        %vm836 = vcmp.lt.s32.totalorder %v835, 2
        %vm837 = vcmp.eq.s32.totalorder %v835, 0
        %v838 = vxor.u32 %v832, 2147483648
        %v839 = vsel %vm837, %v831, %v838
        %vm840 = vcmp.eq.s32.totalorder %v835, 2
        %v841 = vxor.u32 %v831, 2147483648
        %v842 = vsel %vm840, %v841, %v832
        %v843 = vsel %vm836, %v839, %v842
        %v844 = vsel %vm833, nan, %v843
        %v845 = vmul.f32 %v631, %v844
        %v846 = vrcp.pop %v736
        %v847 = vmul.f32 %v740, %v846
        %v848 = vmul.f32 %v845, %v846
        %vm849 = vcmask 64512
        %v850 = vsel %vm849, %v325, 0
        %v853 = vsel %vm849, %v847, 0
        %855 = vmatprep.subr.mxu0 0.0
        %856 = vmatpush1.xpose.msra.mxu0 0.0
        %857 = vmatprep.subr.mxu0 0.0
        %858 = vmatpush1.xpose.msra.mxu0 0.0
        %859 = vmatprep.subr.mxu0 0.0
        %860 = vmatpush1.xpose.msra.mxu0 0.0
        %861 = vmatprep.subr.mxu0 0.0
        %862 = vmatpush1.xpose.msra.mxu0 0.0
        %863 = vmatprep.subr.mxu0 0.0
        %864 = vmatpush1.xpose.msra.mxu0 0.0
        %865 = vmatprep.subr.mxu0 0.0
        %866 = vmatpush1.xpose.msra.mxu0 0.0
        %867 = vmatprep.subr.mxu0 0.0
        %868 = vmatpush1.xpose.msra.mxu0 0.0
        %869 = vmatprep.subr.mxu0 0.0
        %870 = vmatpush1.xpose.msra.mxu0 0.0
        %871 = vmatprep.subr.mxu0 0.0
        %872 = vmatpush1.xpose.msra.mxu0 0.0
        %873 = vmatprep.subr.mxu0 0.0
        %874 = vmatpush1.xpose.msra.mxu0 0.0
        %875 = vmatprep.subr.mxu0 0.0
        %876 = vmatpush1.xpose.msra.mxu0 0.0
        %877 = vmatprep.subr.mxu0 0.0
        %878 = vmatpush1.xpose.msra.mxu0 0.0
        %879 = vmatprep.subr.mxu0 0.0
        %880 = vmatpush1.xpose.msra.mxu0 0.0
        %881 = vmatprep.subr.mxu0 0.0
        %882 = vmatpush1.xpose.msra.mxu0 0.0
        %883 = vmatprep.subr.mxu0 0.0
        %884 = vmatpush1.xpose.msra.mxu0 0.0
        %885 = vmatprep.subr.mxu0 0.0
        %886 = vmatpush1.xpose.msra.mxu0 %v853
        %887 = vmatprep.subr.mxu0 0.0
        %888 = vmatpush2.xpose.msra.mxu0 0.0
        %889 = vmatprep.subr.mxu0 0.0
        %890 = vmatpush2.xpose.msra.mxu0 0.0
        %891 = vmatprep.subr.mxu0 0.0
        %892 = vmatpush2.xpose.msra.mxu0 0.0
        %893 = vmatprep.subr.mxu0 0.0
        %894 = vmatpush2.xpose.msra.mxu0 0.0
        %895 = vmatprep.subr.mxu0 0.0
        %896 = vmatpush2.xpose.msra.mxu0 0.0
        %897 = vmatprep.subr.mxu0 0.0
        %898 = vmatpush2.xpose.msra.mxu0 0.0
        %899 = vmatprep.subr.mxu0 0.0
        %900 = vmatpush2.xpose.msra.mxu0 0.0
        %901 = vmatprep.subr.mxu0 0.0
        %902 = vmatpush2.xpose.msra.mxu0 0.0
        %903 = vmatprep.subr.mxu0 0.0
        %904 = vmatpush2.xpose.msra.mxu0 0.0
        %905 = vmatprep.subr.mxu0 0.0
        %906 = vmatpush2.xpose.msra.mxu0 0.0
        %907 = vmatprep.subr.mxu0 0.0
        %908 = vmatpush2.xpose.msra.mxu0 0.0
        %909 = vmatprep.subr.mxu0 0.0
        %910 = vmatpush2.xpose.msra.mxu0 0.0
        %911 = vmatprep.subr.mxu0 0.0
        %912 = vmatpush2.xpose.msra.mxu0 0.0
        %913 = vmatprep.subr.mxu0 0.0
        %914 = vmatpush2.xpose.msra.mxu0 0.0
        %915 = vmatprep.subr.mxu0 0.0
        %916 = vmatpush2.xpose.msra.mxu0 0.0
        %917 = vmatprep.subr.mxu0 0.0
        %918 = vmatpush2.xpose.msra.mxu0 0.0
        %919 = vmatprep.mubr.f32.mxu0 0.0
        %920 = vmatmul.mubr.f32.gmra.mxu0 %v850
        %v921 = vpop.f32.mrf.mxu0
        %v922 = vadd.f32 0.0, %v921
        %v923 = vpop.f32.mrf.mxu0
        %924 = vdwg.mxu0
        %v925 = vsel %vm849, %v327, 0
        %v928 = vsel %vm849, %v848, 0
        %930 = vmatprep.subr.mxu0 0.0
        %931 = vmatpush1.xpose.msra.mxu0 0.0
        %932 = vmatprep.subr.mxu0 0.0
        %933 = vmatpush1.xpose.msra.mxu0 0.0
        %934 = vmatprep.subr.mxu0 0.0
        %935 = vmatpush1.xpose.msra.mxu0 0.0
        %936 = vmatprep.subr.mxu0 0.0
        %937 = vmatpush1.xpose.msra.mxu0 0.0
        %938 = vmatprep.subr.mxu0 0.0
        %939 = vmatpush1.xpose.msra.mxu0 0.0
        %940 = vmatprep.subr.mxu0 0.0
        %941 = vmatpush1.xpose.msra.mxu0 0.0
        %942 = vmatprep.subr.mxu0 0.0
        %943 = vmatpush1.xpose.msra.mxu0 0.0
        %944 = vmatprep.subr.mxu0 0.0
        %945 = vmatpush1.xpose.msra.mxu0 0.0
        %946 = vmatprep.subr.mxu0 0.0
        %947 = vmatpush1.xpose.msra.mxu0 0.0
        %948 = vmatprep.subr.mxu0 0.0
        %949 = vmatpush1.xpose.msra.mxu0 0.0
        %950 = vmatprep.subr.mxu0 0.0
        %951 = vmatpush1.xpose.msra.mxu0 0.0
        %952 = vmatprep.subr.mxu0 0.0
        %953 = vmatpush1.xpose.msra.mxu0 0.0
        %954 = vmatprep.subr.mxu0 0.0
        %955 = vmatpush1.xpose.msra.mxu0 0.0
        %956 = vmatprep.subr.mxu0 0.0
        %957 = vmatpush1.xpose.msra.mxu0 0.0
        %958 = vmatprep.subr.mxu0 0.0
        %959 = vmatpush1.xpose.msra.mxu0 0.0
        %960 = vmatprep.subr.mxu0 0.0
        %961 = vmatpush1.xpose.msra.mxu0 %v928
        %962 = vmatprep.subr.mxu0 0.0
        %963 = vmatpush2.xpose.msra.mxu0 0.0
        %964 = vmatprep.subr.mxu0 0.0
        %965 = vmatpush2.xpose.msra.mxu0 0.0
        %966 = vmatprep.subr.mxu0 0.0
        %967 = vmatpush2.xpose.msra.mxu0 0.0
        %968 = vmatprep.subr.mxu0 0.0
        %969 = vmatpush2.xpose.msra.mxu0 0.0
        %970 = vmatprep.subr.mxu0 0.0
        %971 = vmatpush2.xpose.msra.mxu0 0.0
        %972 = vmatprep.subr.mxu0 0.0
        %973 = vmatpush2.xpose.msra.mxu0 0.0
        %974 = vmatprep.subr.mxu0 0.0
        %975 = vmatpush2.xpose.msra.mxu0 0.0
        %976 = vmatprep.subr.mxu0 0.0
        %977 = vmatpush2.xpose.msra.mxu0 0.0
        %978 = vmatprep.subr.mxu0 0.0
        %979 = vmatpush2.xpose.msra.mxu0 0.0
        %980 = vmatprep.subr.mxu0 0.0
        %981 = vmatpush2.xpose.msra.mxu0 0.0
        %982 = vmatprep.subr.mxu0 0.0
        %983 = vmatpush2.xpose.msra.mxu0 0.0
        %984 = vmatprep.subr.mxu0 0.0
        %985 = vmatpush2.xpose.msra.mxu0 0.0
        %986 = vmatprep.subr.mxu0 0.0
        %987 = vmatpush2.xpose.msra.mxu0 0.0
        %988 = vmatprep.subr.mxu0 0.0
        %989 = vmatpush2.xpose.msra.mxu0 0.0
        %990 = vmatprep.subr.mxu0 0.0
        %991 = vmatpush2.xpose.msra.mxu0 0.0
        %992 = vmatprep.subr.mxu0 0.0
        %993 = vmatpush2.xpose.msra.mxu0 0.0
        %994 = vmatprep.mubr.f32.mxu0 0.0
        %995 = vmatmul.mubr.f32.gmra.mxu0 %v925
        %v996 = vpop.f32.mrf.mxu0
        %v997 = vadd.f32 0.0, %v996
        %v998 = vpop.f32.mrf.mxu0
        %999 = vdwg.mxu0
        %v1000 = vsub.f32 %v922, %v997
        %1001 = vmatprep.subr.mxu0 0.0
        %1002 = vmatpush1.xpose.msra.mxu0 0.0
        %1003 = vmatprep.subr.mxu0 0.0
        %1004 = vmatpush1.xpose.msra.mxu0 0.0
        %1005 = vmatprep.subr.mxu0 0.0
        %1006 = vmatpush1.xpose.msra.mxu0 0.0
        %1007 = vmatprep.subr.mxu0 0.0
        %1008 = vmatpush1.xpose.msra.mxu0 0.0
        %1009 = vmatprep.subr.mxu0 0.0
        %1010 = vmatpush1.xpose.msra.mxu0 0.0
        %1011 = vmatprep.subr.mxu0 0.0
        %1012 = vmatpush1.xpose.msra.mxu0 0.0
        %1013 = vmatprep.subr.mxu0 0.0
        %1014 = vmatpush1.xpose.msra.mxu0 0.0
        %1015 = vmatprep.subr.mxu0 0.0
        %1016 = vmatpush1.xpose.msra.mxu0 0.0
        %1017 = vmatprep.subr.mxu0 0.0
        %1018 = vmatpush1.xpose.msra.mxu0 0.0
        %1019 = vmatprep.subr.mxu0 0.0
        %1020 = vmatpush1.xpose.msra.mxu0 0.0
        %1021 = vmatprep.subr.mxu0 0.0
        %1022 = vmatpush1.xpose.msra.mxu0 0.0
        %1023 = vmatprep.subr.mxu0 0.0
        %1024 = vmatpush1.xpose.msra.mxu0 0.0
        %1025 = vmatprep.subr.mxu0 0.0
        %1026 = vmatpush1.xpose.msra.mxu0 0.0
        %1027 = vmatprep.subr.mxu0 0.0
        %1028 = vmatpush1.xpose.msra.mxu0 0.0
        %1029 = vmatprep.subr.mxu0 0.0
        %1030 = vmatpush1.xpose.msra.mxu0 0.0
        %1031 = vmatprep.subr.mxu0 0.0
        %1032 = vmatpush1.xpose.msra.mxu0 %v853
        %1033 = vmatprep.subr.mxu0 0.0
        %1034 = vmatpush2.xpose.msra.mxu0 0.0
        %1035 = vmatprep.subr.mxu0 0.0
        %1036 = vmatpush2.xpose.msra.mxu0 0.0
        %1037 = vmatprep.subr.mxu0 0.0
        %1038 = vmatpush2.xpose.msra.mxu0 0.0
        %1039 = vmatprep.subr.mxu0 0.0
        %1040 = vmatpush2.xpose.msra.mxu0 0.0
        %1041 = vmatprep.subr.mxu0 0.0
        %1042 = vmatpush2.xpose.msra.mxu0 0.0
        %1043 = vmatprep.subr.mxu0 0.0
        %1044 = vmatpush2.xpose.msra.mxu0 0.0
        %1045 = vmatprep.subr.mxu0 0.0
        %1046 = vmatpush2.xpose.msra.mxu0 0.0
        %1047 = vmatprep.subr.mxu0 0.0
        %1048 = vmatpush2.xpose.msra.mxu0 0.0
        %1049 = vmatprep.subr.mxu0 0.0
        %1050 = vmatpush2.xpose.msra.mxu0 0.0
        %1051 = vmatprep.subr.mxu0 0.0
        %1052 = vmatpush2.xpose.msra.mxu0 0.0
        %1053 = vmatprep.subr.mxu0 0.0
        %1054 = vmatpush2.xpose.msra.mxu0 0.0
        %1055 = vmatprep.subr.mxu0 0.0
        %1056 = vmatpush2.xpose.msra.mxu0 0.0
        %1057 = vmatprep.subr.mxu0 0.0
        %1058 = vmatpush2.xpose.msra.mxu0 0.0
        %1059 = vmatprep.subr.mxu0 0.0
        %1060 = vmatpush2.xpose.msra.mxu0 0.0
        %1061 = vmatprep.subr.mxu0 0.0
        %1062 = vmatpush2.xpose.msra.mxu0 0.0
        %1063 = vmatprep.subr.mxu0 0.0
        %1064 = vmatpush2.xpose.msra.mxu0 0.0
        %1065 = vmatprep.mubr.f32.mxu0 0.0
        %1066 = vmatmul.mubr.f32.gmra.mxu0 %v925
        %v1067 = vpop.f32.mrf.mxu0
        %v1068 = vadd.f32 0.0, %v1067
        %v1069 = vpop.f32.mrf.mxu0
        %1070 = vdwg.mxu0
        %1071 = vmatprep.subr.mxu0 0.0
        %1072 = vmatpush1.xpose.msra.mxu0 0.0
        %1073 = vmatprep.subr.mxu0 0.0
        %1074 = vmatpush1.xpose.msra.mxu0 0.0
        %1075 = vmatprep.subr.mxu0 0.0
        %1076 = vmatpush1.xpose.msra.mxu0 0.0
        %1077 = vmatprep.subr.mxu0 0.0
        %1078 = vmatpush1.xpose.msra.mxu0 0.0
        %1079 = vmatprep.subr.mxu0 0.0
        %1080 = vmatpush1.xpose.msra.mxu0 0.0
        %1081 = vmatprep.subr.mxu0 0.0
        %1082 = vmatpush1.xpose.msra.mxu0 0.0
        %1083 = vmatprep.subr.mxu0 0.0
        %1084 = vmatpush1.xpose.msra.mxu0 0.0
        %1085 = vmatprep.subr.mxu0 0.0
        %1086 = vmatpush1.xpose.msra.mxu0 0.0
        %1087 = vmatprep.subr.mxu0 0.0
        %1088 = vmatpush1.xpose.msra.mxu0 0.0
        %1089 = vmatprep.subr.mxu0 0.0
        %1090 = vmatpush1.xpose.msra.mxu0 0.0
        %1091 = vmatprep.subr.mxu0 0.0
        %1092 = vmatpush1.xpose.msra.mxu0 0.0
        %1093 = vmatprep.subr.mxu0 0.0
        %1094 = vmatpush1.xpose.msra.mxu0 0.0
        %1095 = vmatprep.subr.mxu0 0.0
        %1096 = vmatpush1.xpose.msra.mxu0 0.0
        %1097 = vmatprep.subr.mxu0 0.0
        %1098 = vmatpush1.xpose.msra.mxu0 0.0
        %1099 = vmatprep.subr.mxu0 0.0
        %1100 = vmatpush1.xpose.msra.mxu0 0.0
        %1101 = vmatprep.subr.mxu0 0.0
        %1102 = vmatpush1.xpose.msra.mxu0 %v928
        %1103 = vmatprep.subr.mxu0 0.0
        %1104 = vmatpush2.xpose.msra.mxu0 0.0
        %1105 = vmatprep.subr.mxu0 0.0
        %1106 = vmatpush2.xpose.msra.mxu0 0.0
        %1107 = vmatprep.subr.mxu0 0.0
        %1108 = vmatpush2.xpose.msra.mxu0 0.0
        %1109 = vmatprep.subr.mxu0 0.0
        %1110 = vmatpush2.xpose.msra.mxu0 0.0
        %1111 = vmatprep.subr.mxu0 0.0
        %1112 = vmatpush2.xpose.msra.mxu0 0.0
        %1113 = vmatprep.subr.mxu0 0.0
        %1114 = vmatpush2.xpose.msra.mxu0 0.0
        %1115 = vmatprep.subr.mxu0 0.0
        %1116 = vmatpush2.xpose.msra.mxu0 0.0
        %1117 = vmatprep.subr.mxu0 0.0
        %1118 = vmatpush2.xpose.msra.mxu0 0.0
        %1119 = vmatprep.subr.mxu0 0.0
        %1120 = vmatpush2.xpose.msra.mxu0 0.0
        %1121 = vmatprep.subr.mxu0 0.0
        %1122 = vmatpush2.xpose.msra.mxu0 0.0
        %1123 = vmatprep.subr.mxu0 0.0
        %1124 = vmatpush2.xpose.msra.mxu0 0.0
        %1125 = vmatprep.subr.mxu0 0.0
        %1126 = vmatpush2.xpose.msra.mxu0 0.0
        %1127 = vmatprep.subr.mxu0 0.0
        %1128 = vmatpush2.xpose.msra.mxu0 0.0
        %1129 = vmatprep.subr.mxu0 0.0
        %1130 = vmatpush2.xpose.msra.mxu0 0.0
        %1131 = vmatprep.subr.mxu0 0.0
        %1132 = vmatpush2.xpose.msra.mxu0 0.0
        %1133 = vmatprep.subr.mxu0 0.0
        %1134 = vmatpush2.xpose.msra.mxu0 0.0
        %1135 = vmatprep.mubr.f32.mxu0 0.0
        %1136 = vmatmul.mubr.f32.gmra.mxu0 %v850
        %v1137 = vpop.f32.mrf.mxu0
        %v1138 = vadd.f32 %v1068, %v1137
        %v1139 = vpop.f32.mrf.mxu0
        %1140 = vdwg.mxu0
        %v1141 = vlaneseq
        %v1142 = vshrl.u32 %v1141, 7
        %v1143 = vsub.s32 0, %v1142
        %v1144 = vrot.slane %v1000, %v1143
        %v1145 = vmul.f32 %v1144, %v313
        %v1146 = vlaneseq
        %v1147 = vshrl.u32 %v1146, 7
        %v1148 = vsub.s32 0, %v1147
        %v1149 = vrot.slane %v1138, %v1148
        %v1150 = vmul.f32 %v1149, %v318
        %v1151 = vsub.f32 %v1145, %v1150
        %v1152 = vmul.f32 %v1144, %v318
        %v1153 = vmul.f32 %v1149, %v313
        %v1154 = vadd.f32 %v1152, %v1153
        %v1155 = vlaneseq
        %v1156 = vshrl.u32 %v1155, 7
        %v1157 = vsub.s32 1, %v1156
        %v1158 = vrot.slane %v1000, %v1157
        %v1159 = vmul.f32 %v1158, %v314
        %v1160 = vadd.f32 %v1151, %v1159
        %v1161 = vlaneseq
        %v1162 = vshrl.u32 %v1161, 7
        %v1163 = vsub.s32 1, %v1162
        %v1164 = vrot.slane %v1138, %v1163
        %v1165 = vmul.f32 %v1164, %v319
        %v1166 = vsub.f32 %v1160, %v1165
        %v1167 = vmul.f32 %v1158, %v319
        %v1168 = vadd.f32 %v1154, %v1167
        %v1169 = vmul.f32 %v1164, %v314
        %v1170 = vadd.f32 %v1168, %v1169
        %v1171 = vlaneseq
        %v1172 = vshrl.u32 %v1171, 7
        %v1173 = vsub.s32 2, %v1172
        %v1174 = vrot.slane %v1000, %v1173
        %v1175 = vmul.f32 %v1174, %v315
        %v1176 = vadd.f32 %v1166, %v1175
        %v1177 = vlaneseq
        %v1178 = vshrl.u32 %v1177, 7
        %v1179 = vsub.s32 2, %v1178
        %v1180 = vrot.slane %v1138, %v1179
        %v1181 = vmul.f32 %v1180, %v320
        %v1182 = vsub.f32 %v1176, %v1181
        %v1183 = vmul.f32 %v1174, %v320
        %v1184 = vadd.f32 %v1170, %v1183
        %v1185 = vmul.f32 %v1180, %v315
        %v1186 = vadd.f32 %v1184, %v1185
        %v1187 = vlaneseq
        %v1188 = vshrl.u32 %v1187, 7
        %v1189 = vsub.s32 3, %v1188
        %v1190 = vrot.slane %v1000, %v1189
        %v1191 = vmul.f32 %v1190, %v316
        %v1192 = vadd.f32 %v1182, %v1191
        %v1193 = vlaneseq
        %v1194 = vshrl.u32 %v1193, 7
        %v1195 = vsub.s32 3, %v1194
        %v1196 = vrot.slane %v1138, %v1195
        %v1197 = vmul.f32 %v1196, %v321
        %v1198 = vsub.f32 %v1192, %v1197
        %v1199 = vmul.f32 %v1190, %v321
        %v1200 = vadd.f32 %v1186, %v1199
        %v1201 = vmul.f32 %v1196, %v316
        %v1202 = vadd.f32 %v1200, %v1201
        %vm1203 = vcmask 60416
        %1204 = vst.msk [vmem:[%s307] sm:$0xf] %vm1203, %v1198
        %s1205 = scalar_lea.vmem %s307, 4 [#allocation4]
        %1206 = vst.msk [vmem:[%s1205] sm:$0xf] %vm1203, %v1202
        %s1207 = scalar_lea.vmem %s271, 16 [#allocation2]
        %v1208 = vld [vmem:[%s1207] sm:$0xff]
        %s1209 = scalar_lea.vmem %s271, 24 [#allocation2]
        %v1210 = vld [vmem:[%s1209] sm:$0xff]
        %s1211 = scalar_lea.vmem %s278, 8 [#allocation3]
        %v1212 = vld [vmem:[%s1211] sm:$0xf]
        %s1213 = scalar_lea.vmem %s278, 12 [#allocation3]
        %v1214 = vld [vmem:[%s1213] sm:$0xf]
        %v1216 = vsel %vm328, %v1208, 0
        %v1219 = vsel %vm332, %v1212, 0
        %1221 = vmatprep.subr.mxu0 0.0
        %1222 = vmatpush1.msra.mxu0 0.0
        %1223 = vmatprep.subr.mxu0 0.0
        %1224 = vmatpush1.msra.mxu0 0.0
        %1225 = vmatprep.subr.mxu0 0.0
        %1226 = vmatpush1.msra.mxu0 0.0
        %1227 = vmatprep.subr.mxu0 0.0
        %1228 = vmatpush1.msra.mxu0 0.0
        %1229 = vmatprep.subr.mxu0 0.0
        %1230 = vmatpush1.msra.mxu0 0.0
        %1231 = vmatprep.subr.mxu0 0.0
        %1232 = vmatpush1.msra.mxu0 0.0
        %1233 = vmatprep.subr.mxu0 0.0
        %1234 = vmatpush1.msra.mxu0 0.0
        %1235 = vmatprep.subr.mxu0 0.0
        %1236 = vmatpush1.msra.mxu0 0.0
        %1237 = vmatprep.subr.mxu0 0.0
        %1238 = vmatpush1.msra.mxu0 0.0
        %1239 = vmatprep.subr.mxu0 0.0
        %1240 = vmatpush1.msra.mxu0 0.0
        %1241 = vmatprep.subr.mxu0 0.0
        %1242 = vmatpush1.msra.mxu0 0.0
        %1243 = vmatprep.subr.mxu0 0.0
        %1244 = vmatpush1.msra.mxu0 0.0
        %1245 = vmatprep.subr.mxu0 0.0
        %1246 = vmatpush1.msra.mxu0 0.0
        %1247 = vmatprep.subr.mxu0 0.0
        %1248 = vmatpush1.msra.mxu0 0.0
        %1249 = vmatprep.subr.mxu0 0.0
        %1250 = vmatpush1.msra.mxu0 0.0
        %1251 = vmatprep.subr.mxu0 0.0
        %1252 = vmatpush1.msra.mxu0 %v1219
        %1253 = vmatprep.subr.mxu0 0.0
        %1254 = vmatpush2.msra.mxu0 0.0
        %1255 = vmatprep.subr.mxu0 0.0
        %1256 = vmatpush2.msra.mxu0 0.0
        %1257 = vmatprep.subr.mxu0 0.0
        %1258 = vmatpush2.msra.mxu0 0.0
        %1259 = vmatprep.subr.mxu0 0.0
        %1260 = vmatpush2.msra.mxu0 0.0
        %1261 = vmatprep.subr.mxu0 0.0
        %1262 = vmatpush2.msra.mxu0 0.0
        %1263 = vmatprep.subr.mxu0 0.0
        %1264 = vmatpush2.msra.mxu0 0.0
        %1265 = vmatprep.subr.mxu0 0.0
        %1266 = vmatpush2.msra.mxu0 0.0
        %1267 = vmatprep.subr.mxu0 0.0
        %1268 = vmatpush2.msra.mxu0 0.0
        %1269 = vmatprep.subr.mxu0 0.0
        %1270 = vmatpush2.msra.mxu0 0.0
        %1271 = vmatprep.subr.mxu0 0.0
        %1272 = vmatpush2.msra.mxu0 0.0
        %1273 = vmatprep.subr.mxu0 0.0
        %1274 = vmatpush2.msra.mxu0 0.0
        %1275 = vmatprep.subr.mxu0 0.0
        %1276 = vmatpush2.msra.mxu0 0.0
        %1277 = vmatprep.subr.mxu0 0.0
        %1278 = vmatpush2.msra.mxu0 0.0
        %1279 = vmatprep.subr.mxu0 0.0
        %1280 = vmatpush2.msra.mxu0 0.0
        %1281 = vmatprep.subr.mxu0 0.0
        %1282 = vmatpush2.msra.mxu0 0.0
        %1283 = vmatprep.subr.mxu0 0.0
        %1284 = vmatpush2.msra.mxu0 0.0
        %1285 = vmatprep.mubr.f32.mxu0 0.0
        %1286 = vmatmul.mubr.f32.gmra.mxu0 %v1216
        %v1287 = vpop.f32.mrf.mxu0
        %v1288 = vadd.f32 0.0, %v1287
        %v1289 = vpop.f32.mrf.mxu0
        %1290 = vdwg.mxu0
        %v1292 = vsel %vm328, %v1210, 0
        %v1295 = vsel %vm332, %v1214, 0
        %1297 = vmatprep.subr.mxu0 0.0
        %1298 = vmatpush1.msra.mxu0 0.0
        %1299 = vmatprep.subr.mxu0 0.0
        %1300 = vmatpush1.msra.mxu0 0.0
        %1301 = vmatprep.subr.mxu0 0.0
        %1302 = vmatpush1.msra.mxu0 0.0
        %1303 = vmatprep.subr.mxu0 0.0
        %1304 = vmatpush1.msra.mxu0 0.0
        %1305 = vmatprep.subr.mxu0 0.0
        %1306 = vmatpush1.msra.mxu0 0.0
        %1307 = vmatprep.subr.mxu0 0.0
        %1308 = vmatpush1.msra.mxu0 0.0
        %1309 = vmatprep.subr.mxu0 0.0
        %1310 = vmatpush1.msra.mxu0 0.0
        %1311 = vmatprep.subr.mxu0 0.0
        %1312 = vmatpush1.msra.mxu0 0.0
        %1313 = vmatprep.subr.mxu0 0.0
        %1314 = vmatpush1.msra.mxu0 0.0
        %1315 = vmatprep.subr.mxu0 0.0
        %1316 = vmatpush1.msra.mxu0 0.0
        %1317 = vmatprep.subr.mxu0 0.0
        %1318 = vmatpush1.msra.mxu0 0.0
        %1319 = vmatprep.subr.mxu0 0.0
        %1320 = vmatpush1.msra.mxu0 0.0
        %1321 = vmatprep.subr.mxu0 0.0
        %1322 = vmatpush1.msra.mxu0 0.0
        %1323 = vmatprep.subr.mxu0 0.0
        %1324 = vmatpush1.msra.mxu0 0.0
        %1325 = vmatprep.subr.mxu0 0.0
        %1326 = vmatpush1.msra.mxu0 0.0
        %1327 = vmatprep.subr.mxu0 0.0
        %1328 = vmatpush1.msra.mxu0 %v1295
        %1329 = vmatprep.subr.mxu0 0.0
        %1330 = vmatpush2.msra.mxu0 0.0
        %1331 = vmatprep.subr.mxu0 0.0
        %1332 = vmatpush2.msra.mxu0 0.0
        %1333 = vmatprep.subr.mxu0 0.0
        %1334 = vmatpush2.msra.mxu0 0.0
        %1335 = vmatprep.subr.mxu0 0.0
        %1336 = vmatpush2.msra.mxu0 0.0
        %1337 = vmatprep.subr.mxu0 0.0
        %1338 = vmatpush2.msra.mxu0 0.0
        %1339 = vmatprep.subr.mxu0 0.0
        %1340 = vmatpush2.msra.mxu0 0.0
        %1341 = vmatprep.subr.mxu0 0.0
        %1342 = vmatpush2.msra.mxu0 0.0
        %1343 = vmatprep.subr.mxu0 0.0
        %1344 = vmatpush2.msra.mxu0 0.0
        %1345 = vmatprep.subr.mxu0 0.0
        %1346 = vmatpush2.msra.mxu0 0.0
        %1347 = vmatprep.subr.mxu0 0.0
        %1348 = vmatpush2.msra.mxu0 0.0
        %1349 = vmatprep.subr.mxu0 0.0
        %1350 = vmatpush2.msra.mxu0 0.0
        %1351 = vmatprep.subr.mxu0 0.0
        %1352 = vmatpush2.msra.mxu0 0.0
        %1353 = vmatprep.subr.mxu0 0.0
        %1354 = vmatpush2.msra.mxu0 0.0
        %1355 = vmatprep.subr.mxu0 0.0
        %1356 = vmatpush2.msra.mxu0 0.0
        %1357 = vmatprep.subr.mxu0 0.0
        %1358 = vmatpush2.msra.mxu0 0.0
        %1359 = vmatprep.subr.mxu0 0.0
        %1360 = vmatpush2.msra.mxu0 0.0
        %1361 = vmatprep.mubr.f32.mxu0 0.0
        %1362 = vmatmul.mubr.f32.gmra.mxu0 %v1292
        %v1363 = vpop.f32.mrf.mxu0
        %v1364 = vadd.f32 0.0, %v1363
        %v1365 = vpop.f32.mrf.mxu0
        %1366 = vdwg.mxu0
        %v1367 = vsub.f32 %v1288, %v1364
        %1368 = vmatprep.subr.mxu0 0.0
        %1369 = vmatpush1.msra.mxu0 0.0
        %1370 = vmatprep.subr.mxu0 0.0
        %1371 = vmatpush1.msra.mxu0 0.0
        %1372 = vmatprep.subr.mxu0 0.0
        %1373 = vmatpush1.msra.mxu0 0.0
        %1374 = vmatprep.subr.mxu0 0.0
        %1375 = vmatpush1.msra.mxu0 0.0
        %1376 = vmatprep.subr.mxu0 0.0
        %1377 = vmatpush1.msra.mxu0 0.0
        %1378 = vmatprep.subr.mxu0 0.0
        %1379 = vmatpush1.msra.mxu0 0.0
        %1380 = vmatprep.subr.mxu0 0.0
        %1381 = vmatpush1.msra.mxu0 0.0
        %1382 = vmatprep.subr.mxu0 0.0
        %1383 = vmatpush1.msra.mxu0 0.0
        %1384 = vmatprep.subr.mxu0 0.0
        %1385 = vmatpush1.msra.mxu0 0.0
        %1386 = vmatprep.subr.mxu0 0.0
        %1387 = vmatpush1.msra.mxu0 0.0
        %1388 = vmatprep.subr.mxu0 0.0
        %1389 = vmatpush1.msra.mxu0 0.0
        %1390 = vmatprep.subr.mxu0 0.0
        %1391 = vmatpush1.msra.mxu0 0.0
        %1392 = vmatprep.subr.mxu0 0.0
        %1393 = vmatpush1.msra.mxu0 0.0
        %1394 = vmatprep.subr.mxu0 0.0
        %1395 = vmatpush1.msra.mxu0 0.0
        %1396 = vmatprep.subr.mxu0 0.0
        %1397 = vmatpush1.msra.mxu0 0.0
        %1398 = vmatprep.subr.mxu0 0.0
        %1399 = vmatpush1.msra.mxu0 %v1219
        %1400 = vmatprep.subr.mxu0 0.0
        %1401 = vmatpush2.msra.mxu0 0.0
        %1402 = vmatprep.subr.mxu0 0.0
        %1403 = vmatpush2.msra.mxu0 0.0
        %1404 = vmatprep.subr.mxu0 0.0
        %1405 = vmatpush2.msra.mxu0 0.0
        %1406 = vmatprep.subr.mxu0 0.0
        %1407 = vmatpush2.msra.mxu0 0.0
        %1408 = vmatprep.subr.mxu0 0.0
        %1409 = vmatpush2.msra.mxu0 0.0
        %1410 = vmatprep.subr.mxu0 0.0
        %1411 = vmatpush2.msra.mxu0 0.0
        %1412 = vmatprep.subr.mxu0 0.0
        %1413 = vmatpush2.msra.mxu0 0.0
        %1414 = vmatprep.subr.mxu0 0.0
        %1415 = vmatpush2.msra.mxu0 0.0
        %1416 = vmatprep.subr.mxu0 0.0
        %1417 = vmatpush2.msra.mxu0 0.0
        %1418 = vmatprep.subr.mxu0 0.0
        %1419 = vmatpush2.msra.mxu0 0.0
        %1420 = vmatprep.subr.mxu0 0.0
        %1421 = vmatpush2.msra.mxu0 0.0
        %1422 = vmatprep.subr.mxu0 0.0
        %1423 = vmatpush2.msra.mxu0 0.0
        %1424 = vmatprep.subr.mxu0 0.0
        %1425 = vmatpush2.msra.mxu0 0.0
        %1426 = vmatprep.subr.mxu0 0.0
        %1427 = vmatpush2.msra.mxu0 0.0
        %1428 = vmatprep.subr.mxu0 0.0
        %1429 = vmatpush2.msra.mxu0 0.0
        %1430 = vmatprep.subr.mxu0 0.0
        %1431 = vmatpush2.msra.mxu0 0.0
        %1432 = vmatprep.mubr.f32.mxu0 0.0
        %1433 = vmatmul.mubr.f32.gmra.mxu0 %v1292
        %v1434 = vpop.f32.mrf.mxu0
        %v1435 = vadd.f32 0.0, %v1434
        %v1436 = vpop.f32.mrf.mxu0
        %1437 = vdwg.mxu0
        %1438 = vmatprep.subr.mxu0 0.0
        %1439 = vmatpush1.msra.mxu0 0.0
        %1440 = vmatprep.subr.mxu0 0.0
        %1441 = vmatpush1.msra.mxu0 0.0
        %1442 = vmatprep.subr.mxu0 0.0
        %1443 = vmatpush1.msra.mxu0 0.0
        %1444 = vmatprep.subr.mxu0 0.0
        %1445 = vmatpush1.msra.mxu0 0.0
        %1446 = vmatprep.subr.mxu0 0.0
        %1447 = vmatpush1.msra.mxu0 0.0
        %1448 = vmatprep.subr.mxu0 0.0
        %1449 = vmatpush1.msra.mxu0 0.0
        %1450 = vmatprep.subr.mxu0 0.0
        %1451 = vmatpush1.msra.mxu0 0.0
        %1452 = vmatprep.subr.mxu0 0.0
        %1453 = vmatpush1.msra.mxu0 0.0
        %1454 = vmatprep.subr.mxu0 0.0
        %1455 = vmatpush1.msra.mxu0 0.0
        %1456 = vmatprep.subr.mxu0 0.0
        %1457 = vmatpush1.msra.mxu0 0.0
        %1458 = vmatprep.subr.mxu0 0.0
        %1459 = vmatpush1.msra.mxu0 0.0
        %1460 = vmatprep.subr.mxu0 0.0
        %1461 = vmatpush1.msra.mxu0 0.0
        %1462 = vmatprep.subr.mxu0 0.0
        %1463 = vmatpush1.msra.mxu0 0.0
        %1464 = vmatprep.subr.mxu0 0.0
        %1465 = vmatpush1.msra.mxu0 0.0
        %1466 = vmatprep.subr.mxu0 0.0
        %1467 = vmatpush1.msra.mxu0 0.0
        %1468 = vmatprep.subr.mxu0 0.0
        %1469 = vmatpush1.msra.mxu0 %v1295
        %1470 = vmatprep.subr.mxu0 0.0
        %1471 = vmatpush2.msra.mxu0 0.0
        %1472 = vmatprep.subr.mxu0 0.0
        %1473 = vmatpush2.msra.mxu0 0.0
        %1474 = vmatprep.subr.mxu0 0.0
        %1475 = vmatpush2.msra.mxu0 0.0
        %1476 = vmatprep.subr.mxu0 0.0
        %1477 = vmatpush2.msra.mxu0 0.0
        %1478 = vmatprep.subr.mxu0 0.0
        %1479 = vmatpush2.msra.mxu0 0.0
        %1480 = vmatprep.subr.mxu0 0.0
        %1481 = vmatpush2.msra.mxu0 0.0
        %1482 = vmatprep.subr.mxu0 0.0
        %1483 = vmatpush2.msra.mxu0 0.0
        %1484 = vmatprep.subr.mxu0 0.0
        %1485 = vmatpush2.msra.mxu0 0.0
        %1486 = vmatprep.subr.mxu0 0.0
        %1487 = vmatpush2.msra.mxu0 0.0
        %1488 = vmatprep.subr.mxu0 0.0
        %1489 = vmatpush2.msra.mxu0 0.0
        %1490 = vmatprep.subr.mxu0 0.0
        %1491 = vmatpush2.msra.mxu0 0.0
        %1492 = vmatprep.subr.mxu0 0.0
        %1493 = vmatpush2.msra.mxu0 0.0
        %1494 = vmatprep.subr.mxu0 0.0
        %1495 = vmatpush2.msra.mxu0 0.0
        %1496 = vmatprep.subr.mxu0 0.0
        %1497 = vmatpush2.msra.mxu0 0.0
        %1498 = vmatprep.subr.mxu0 0.0
        %1499 = vmatpush2.msra.mxu0 0.0
        %1500 = vmatprep.subr.mxu0 0.0
        %1501 = vmatpush2.msra.mxu0 0.0
        %1502 = vmatprep.mubr.f32.mxu0 0.0
        %1503 = vmatmul.mubr.f32.gmra.mxu0 %v1216
        %v1504 = vpop.f32.mrf.mxu0
        %v1505 = vadd.f32 %v1435, %v1504
        %v1506 = vpop.f32.mrf.mxu0
        %1507 = vdwg.mxu0
        %v1508 = vmul.f32 %v1367, 2.0
        %v1509 = vmul.f32 %v1505, 2.0
        %v1510 = vand.u32 2147483647, %v1508
        %v1511 = vsub.f32 0.0, %v1510
        %v1512 = vmul.f32 %v1511, 1.442695
        %v1513 = vpow.pop %v1512
        %v1514 = vmul.f32 %v1513, %v1513
        %v1515 = vadd.f32 %v1514, 1.0
        %v1516 = vmul.f32 %v1513, 2.0
        %v1517 = vand.u32 2147483647, %v1509
        %vm1518 = vcmp.le.f32.partialorder %v1517, 0.7853982
        %vm1519 = vcmp.lt.s32.totalorder %v1509, 0
        %v1520 = vand.u32 %v1509, 2139095040
        %v1521 = vshrl.u32 %v1520, 23
        %v1522 = vsub.s32 %v1521, 127
        %v1523 = vand.u32 2147483647, %v1509
        %v1524 = vand.u32 %v1523, 8388607
        %v1525 = vor.u32 %v1524, 8388608
        %v1526 = vsub.s32 0, %v1525
        %v1527 = vadd.s32 %v1522, 1
        %vm1528 = vcmp.gt.s32.totalorder %v1527, 0
        %v1529 = vsel %vm1528, %v1527, 0
        %v1530 = vshrl.u32 %v1529, 5
        %v1531 = vand.u32 %v1529, 31
        %v1532 = vsub.s32 32, %v1531
        %v1533 = vshrl.u32 683565275, %v1532
        %v1534 = vshll.u32 683565275, %v1531
        %v1535 = vshrl.u32 2475754826, %v1532
        %v1536 = vor.u32 %v1534, %v1535
        %v1537 = vshll.u32 2475754826, %v1531
        %v1538 = vshrl.u32 2131351028, %v1532
        %v1539 = vor.u32 %v1537, %v1538
        %v1540 = vshll.u32 2131351028, %v1531
        %v1541 = vshrl.u32 2102212464, %v1532
        %v1542 = vor.u32 %v1540, %v1541
        %v1543 = vshll.u32 2102212464, %v1531
        %v1544 = vshrl.u32 920167782, %v1532
        %v1545 = vor.u32 %v1543, %v1544
        %v1546 = vshll.u32 920167782, %v1531
        %v1547 = vshrl.u32 1326507024, %v1532
        %v1548 = vor.u32 %v1546, %v1547
        %vm1549 = vcmp.lt.s32.totalorder %v1530, 1
        %vm1550 = vcmp.lt.s32.totalorder %v1530, 2
        %vm1551 = vcmp.lt.s32.totalorder %v1530, 3
        %vm1552 = vcmp.lt.s32.totalorder %v1530, 4
        %v1553 = vsel %vm1549, %v1533, %v1536
        %v1554 = vsel %vm1552, %v1542, 2102212464
        %v1555 = vsel %vm1551, %v1539, %v1554
        %v1556 = vsel %vm1550, %v1553, %v1555
        %v1557 = vsel %vm1549, %v1536, %v1539
        %v1558 = vsel %vm1552, %v1545, 920167782
        %v1559 = vsel %vm1551, %v1542, %v1558
        %v1560 = vsel %vm1550, %v1557, %v1559
        %v1561 = vsel %vm1549, %v1539, %v1542
        %v1562 = vsel %vm1552, %v1548, 1326507024
        %v1563 = vsel %vm1551, %v1545, %v1562
        %v1564 = vsel %vm1550, %v1561, %v1563
        %v1565 = vshll.u32 %v1525, 8
        %v1566 = vmul.u32.u64.compose %v1565, %v1564
        %v1567 = vextract.low.u32 %v1566
        %v1568 = vextract.high.u32 %v1566
        %v1569 = vmul.u32.u64.compose %v1565, %v1560
        %v1570 = vextract.low.u32 %v1569
        %v1571 = vextract.high.u32 %v1569
        %v1572 = vmul.u32 %v1565, %v1556
        %v1573 = vadd.s32 %v1568, %v1570
        %vm1574 = vc.u32 %v1568, %v1570
        %v1575 = vadd.s32 %v1571, 1
        %v1576 = vsel %vm1574, %v1575, %v1571
        %v1577 = vadd.s32 %v1572, %v1576
        %v1578 = vadd.s32 %v1577, 536870912
        %v1579 = vshrl.u32 %v1578, 30
        %v1580 = vshll.u32 %v1579, 30
        %v1581 = vsub.s32 %v1577, %v1580
        %vm1582 = vcmp.lt.s32.totalorder %v1581, 0
        %v1583 = vsub.s32 0, %v1581
        %v1584 = vsel %vm1582, %v1583, %v1581
        %v1585 = vclz %v1584
        %v1586 = vsub.s32 %v1585, 2
        %vm1587 = vcmp.gt.s32.totalorder 0, %v1586
        %v1588 = vsel %vm1587, 0, %v1586
        %v1589 = vsub.s32 32, %v1588
        %v1590 = vshll.u32 %v1581, %v1588
        %v1591 = vshrl.u32 %v1573, %v1589
        %v1592 = vor.u32 %v1590, %v1591
        %v1593 = vsub.s32 4294967266, %v1588
        %v1594 = vadd.s32 %v1593, 127
        %v1595 = vshll.u32 %v1594, 23
        %v1596 = vor.u32 4788187, %v1595
        %v1597 = vand.u32 2147483647, %v1596
        %v1599 = vcvt.s32.f32 %v1592
        %v1600 = vmul.f32 %v1599, %v1597
        %v1601 = vxor.u32 %v1600, 2147483648
        %v1602 = vsel %vm1519, %v1601, %v1600
        %v1603 = vsub.s32 4, %v1579
        %v1604 = vsel %vm1519, %v1603, %v1579
        %v1605 = vsel %vm1518, %v1509, %v1602
        %v1606 = vsel %vm1518, 0, %v1604
        %v1607 = vcosq.f32.pop %v1605
        %v1608 = vsinq.f32.pop %v1605
        %vm1609 = vweird.f32 %v1509
        %v1610 = vand.u32 %v1606, 3
        %vm1611 = vcmp.lt.s32.totalorder %v1610, 2
        %vm1612 = vcmp.eq.s32.totalorder %v1610, 0
        %v1613 = vxor.u32 %v1608, 2147483648
        %v1614 = vsel %vm1612, %v1607, %v1613
        %vm1615 = vcmp.eq.s32.totalorder %v1610, 2
        %v1616 = vxor.u32 %v1607, 2147483648
        %v1617 = vsel %vm1615, %v1616, %v1608
        %v1618 = vsel %vm1611, %v1614, %v1617
        %v1619 = vsel %vm1609, nan, %v1618
        %v1620 = vmul.f32 %v1516, %v1619
        %v1621 = vadd.f32 %v1515, %v1620
        %vm1622 = vcmp.ge.f32.partialorder %v1508, 0.0
        %v1623 = vsel %vm1622, 1.0, -1.0
        %v1624 = vsub.f32 1.0, %v1514
        %v1625 = vmul.f32 %v1623, %v1624
        %v1626 = vand.u32 2147483647, %v1509
        %vm1627 = vcmp.le.f32.partialorder %v1626, 0.7853982
        %vm1628 = vcmp.lt.s32.totalorder %v1509, 0
        %v1629 = vand.u32 %v1509, 2139095040
        %v1630 = vshrl.u32 %v1629, 23
        %v1631 = vsub.s32 %v1630, 127
        %v1632 = vand.u32 2147483647, %v1509
        %v1633 = vand.u32 %v1632, 8388607
        %v1634 = vor.u32 %v1633, 8388608
        %v1635 = vsub.s32 0, %v1634
        %v1636 = vadd.s32 %v1631, 1
        %vm1637 = vcmp.gt.s32.totalorder %v1636, 0
        %v1638 = vsel %vm1637, %v1636, 0
        %v1639 = vshrl.u32 %v1638, 5
        %v1640 = vand.u32 %v1638, 31
        %v1641 = vsub.s32 32, %v1640
        %v1642 = vshrl.u32 683565275, %v1641
        %v1643 = vshll.u32 683565275, %v1640
        %v1644 = vshrl.u32 2475754826, %v1641
        %v1645 = vor.u32 %v1643, %v1644
        %v1646 = vshll.u32 2475754826, %v1640
        %v1647 = vshrl.u32 2131351028, %v1641
        %v1648 = vor.u32 %v1646, %v1647
        %v1649 = vshll.u32 2131351028, %v1640
        %v1650 = vshrl.u32 2102212464, %v1641
        %v1651 = vor.u32 %v1649, %v1650
        %v1652 = vshll.u32 2102212464, %v1640
        %v1653 = vshrl.u32 920167782, %v1641
        %v1654 = vor.u32 %v1652, %v1653
        %v1655 = vshll.u32 920167782, %v1640
        %v1656 = vshrl.u32 1326507024, %v1641
        %v1657 = vor.u32 %v1655, %v1656
        %vm1658 = vcmp.lt.s32.totalorder %v1639, 1
        %vm1659 = vcmp.lt.s32.totalorder %v1639, 2
        %vm1660 = vcmp.lt.s32.totalorder %v1639, 3
        %vm1661 = vcmp.lt.s32.totalorder %v1639, 4
        %v1662 = vsel %vm1658, %v1642, %v1645
        %v1663 = vsel %vm1661, %v1651, 2102212464
        %v1664 = vsel %vm1660, %v1648, %v1663
        %v1665 = vsel %vm1659, %v1662, %v1664
        %v1666 = vsel %vm1658, %v1645, %v1648
        %v1667 = vsel %vm1661, %v1654, 920167782
        %v1668 = vsel %vm1660, %v1651, %v1667
        %v1669 = vsel %vm1659, %v1666, %v1668
        %v1670 = vsel %vm1658, %v1648, %v1651
        %v1671 = vsel %vm1661, %v1657, 1326507024
        %v1672 = vsel %vm1660, %v1654, %v1671
        %v1673 = vsel %vm1659, %v1670, %v1672
        %v1674 = vshll.u32 %v1634, 8
        %v1675 = vmul.u32.u64.compose %v1674, %v1673
        %v1676 = vextract.low.u32 %v1675
        %v1677 = vextract.high.u32 %v1675
        %v1678 = vmul.u32.u64.compose %v1674, %v1669
        %v1679 = vextract.low.u32 %v1678
        %v1680 = vextract.high.u32 %v1678
        %v1681 = vmul.u32 %v1674, %v1665
        %v1682 = vadd.s32 %v1677, %v1679
        %vm1683 = vc.u32 %v1677, %v1679
        %v1684 = vadd.s32 %v1680, 1
        %v1685 = vsel %vm1683, %v1684, %v1680
        %v1686 = vadd.s32 %v1681, %v1685
        %v1687 = vadd.s32 %v1686, 536870912
        %v1688 = vshrl.u32 %v1687, 30
        %v1689 = vshll.u32 %v1688, 30
        %v1690 = vsub.s32 %v1686, %v1689
        %vm1691 = vcmp.lt.s32.totalorder %v1690, 0
        %v1692 = vsub.s32 0, %v1690
        %v1693 = vsel %vm1691, %v1692, %v1690
        %v1694 = vclz %v1693
        %v1695 = vsub.s32 %v1694, 2
        %vm1696 = vcmp.gt.s32.totalorder 0, %v1695
        %v1697 = vsel %vm1696, 0, %v1695
        %v1698 = vsub.s32 32, %v1697
        %v1699 = vshll.u32 %v1690, %v1697
        %v1700 = vshrl.u32 %v1682, %v1698
        %v1701 = vor.u32 %v1699, %v1700
        %v1702 = vsub.s32 4294967266, %v1697
        %v1703 = vadd.s32 %v1702, 127
        %v1704 = vshll.u32 %v1703, 23
        %v1705 = vor.u32 4788187, %v1704
        %v1706 = vand.u32 2147483647, %v1705
        %v1708 = vcvt.s32.f32 %v1701
        %v1709 = vmul.f32 %v1708, %v1706
        %v1710 = vxor.u32 %v1709, 2147483648
        %v1711 = vsel %vm1628, %v1710, %v1709
        %v1712 = vsub.s32 4, %v1688
        %v1713 = vsel %vm1628, %v1712, %v1688
        %v1714 = vsel %vm1627, %v1509, %v1711
        %v1715 = vsel %vm1627, 0, %v1713
        %v1716 = vcosq.f32.pop %v1714
        %v1717 = vsinq.f32.pop %v1714
        %vm1718 = vweird.f32 %v1509
        %v1719 = vadd.s32 %v1715, 3
        %v1720 = vand.u32 %v1719, 3
        %vm1721 = vcmp.lt.s32.totalorder %v1720, 2
        %vm1722 = vcmp.eq.s32.totalorder %v1720, 0
        %v1723 = vxor.u32 %v1717, 2147483648
        %v1724 = vsel %vm1722, %v1716, %v1723
        %vm1725 = vcmp.eq.s32.totalorder %v1720, 2
        %v1726 = vxor.u32 %v1716, 2147483648
        %v1727 = vsel %vm1725, %v1726, %v1717
        %v1728 = vsel %vm1721, %v1724, %v1727
        %v1729 = vsel %vm1718, nan, %v1728
        %v1730 = vmul.f32 %v1516, %v1729
        %v1731 = vrcp.pop %v1621
        %v1732 = vmul.f32 %v1625, %v1731
        %v1733 = vmul.f32 %v1730, %v1731
        %v1734 = vsel %vm849, %v1212, 0
        %v1737 = vsel %vm849, %v1732, 0
        %1739 = vmatprep.subr.mxu0 0.0
        %1740 = vmatpush1.xpose.msra.mxu0 0.0
        %1741 = vmatprep.subr.mxu0 0.0
        %1742 = vmatpush1.xpose.msra.mxu0 0.0
        %1743 = vmatprep.subr.mxu0 0.0
        %1744 = vmatpush1.xpose.msra.mxu0 0.0
        %1745 = vmatprep.subr.mxu0 0.0
        %1746 = vmatpush1.xpose.msra.mxu0 0.0
        %1747 = vmatprep.subr.mxu0 0.0
        %1748 = vmatpush1.xpose.msra.mxu0 0.0
        %1749 = vmatprep.subr.mxu0 0.0
        %1750 = vmatpush1.xpose.msra.mxu0 0.0
        %1751 = vmatprep.subr.mxu0 0.0
        %1752 = vmatpush1.xpose.msra.mxu0 0.0
        %1753 = vmatprep.subr.mxu0 0.0
        %1754 = vmatpush1.xpose.msra.mxu0 0.0
        %1755 = vmatprep.subr.mxu0 0.0
        %1756 = vmatpush1.xpose.msra.mxu0 0.0
        %1757 = vmatprep.subr.mxu0 0.0
        %1758 = vmatpush1.xpose.msra.mxu0 0.0
        %1759 = vmatprep.subr.mxu0 0.0
        %1760 = vmatpush1.xpose.msra.mxu0 0.0
        %1761 = vmatprep.subr.mxu0 0.0
        %1762 = vmatpush1.xpose.msra.mxu0 0.0
        %1763 = vmatprep.subr.mxu0 0.0
        %1764 = vmatpush1.xpose.msra.mxu0 0.0
        %1765 = vmatprep.subr.mxu0 0.0
        %1766 = vmatpush1.xpose.msra.mxu0 0.0
        %1767 = vmatprep.subr.mxu0 0.0
        %1768 = vmatpush1.xpose.msra.mxu0 0.0
        %1769 = vmatprep.subr.mxu0 0.0
        %1770 = vmatpush1.xpose.msra.mxu0 %v1737
        %1771 = vmatprep.subr.mxu0 0.0
        %1772 = vmatpush2.xpose.msra.mxu0 0.0
        %1773 = vmatprep.subr.mxu0 0.0
        %1774 = vmatpush2.xpose.msra.mxu0 0.0
        %1775 = vmatprep.subr.mxu0 0.0
        %1776 = vmatpush2.xpose.msra.mxu0 0.0
        %1777 = vmatprep.subr.mxu0 0.0
        %1778 = vmatpush2.xpose.msra.mxu0 0.0
        %1779 = vmatprep.subr.mxu0 0.0
        %1780 = vmatpush2.xpose.msra.mxu0 0.0
        %1781 = vmatprep.subr.mxu0 0.0
        %1782 = vmatpush2.xpose.msra.mxu0 0.0
        %1783 = vmatprep.subr.mxu0 0.0
        %1784 = vmatpush2.xpose.msra.mxu0 0.0
        %1785 = vmatprep.subr.mxu0 0.0
        %1786 = vmatpush2.xpose.msra.mxu0 0.0
        %1787 = vmatprep.subr.mxu0 0.0
        %1788 = vmatpush2.xpose.msra.mxu0 0.0
        %1789 = vmatprep.subr.mxu0 0.0
        %1790 = vmatpush2.xpose.msra.mxu0 0.0
        %1791 = vmatprep.subr.mxu0 0.0
        %1792 = vmatpush2.xpose.msra.mxu0 0.0
        %1793 = vmatprep.subr.mxu0 0.0
        %1794 = vmatpush2.xpose.msra.mxu0 0.0
        %1795 = vmatprep.subr.mxu0 0.0
        %1796 = vmatpush2.xpose.msra.mxu0 0.0
        %1797 = vmatprep.subr.mxu0 0.0
        %1798 = vmatpush2.xpose.msra.mxu0 0.0
        %1799 = vmatprep.subr.mxu0 0.0
        %1800 = vmatpush2.xpose.msra.mxu0 0.0
        %1801 = vmatprep.subr.mxu0 0.0
        %1802 = vmatpush2.xpose.msra.mxu0 0.0
        %1803 = vmatprep.mubr.f32.mxu0 0.0
        %1804 = vmatmul.mubr.f32.gmra.mxu0 %v1734
        %v1805 = vpop.f32.mrf.mxu0
        %v1806 = vadd.f32 0.0, %v1805
        %v1807 = vpop.f32.mrf.mxu0
        %1808 = vdwg.mxu0
        %v1809 = vsel %vm849, %v1214, 0
        %v1812 = vsel %vm849, %v1733, 0
        %1814 = vmatprep.subr.mxu0 0.0
        %1815 = vmatpush1.xpose.msra.mxu0 0.0
        %1816 = vmatprep.subr.mxu0 0.0
        %1817 = vmatpush1.xpose.msra.mxu0 0.0
        %1818 = vmatprep.subr.mxu0 0.0
        %1819 = vmatpush1.xpose.msra.mxu0 0.0
        %1820 = vmatprep.subr.mxu0 0.0
        %1821 = vmatpush1.xpose.msra.mxu0 0.0
        %1822 = vmatprep.subr.mxu0 0.0
        %1823 = vmatpush1.xpose.msra.mxu0 0.0
        %1824 = vmatprep.subr.mxu0 0.0
        %1825 = vmatpush1.xpose.msra.mxu0 0.0
        %1826 = vmatprep.subr.mxu0 0.0
        %1827 = vmatpush1.xpose.msra.mxu0 0.0
        %1828 = vmatprep.subr.mxu0 0.0
        %1829 = vmatpush1.xpose.msra.mxu0 0.0
        %1830 = vmatprep.subr.mxu0 0.0
        %1831 = vmatpush1.xpose.msra.mxu0 0.0
        %1832 = vmatprep.subr.mxu0 0.0
        %1833 = vmatpush1.xpose.msra.mxu0 0.0
        %1834 = vmatprep.subr.mxu0 0.0
        %1835 = vmatpush1.xpose.msra.mxu0 0.0
        %1836 = vmatprep.subr.mxu0 0.0
        %1837 = vmatpush1.xpose.msra.mxu0 0.0
        %1838 = vmatprep.subr.mxu0 0.0
        %1839 = vmatpush1.xpose.msra.mxu0 0.0
        %1840 = vmatprep.subr.mxu0 0.0
        %1841 = vmatpush1.xpose.msra.mxu0 0.0
        %1842 = vmatprep.subr.mxu0 0.0
        %1843 = vmatpush1.xpose.msra.mxu0 0.0
        %1844 = vmatprep.subr.mxu0 0.0
        %1845 = vmatpush1.xpose.msra.mxu0 %v1812
        %1846 = vmatprep.subr.mxu0 0.0
        %1847 = vmatpush2.xpose.msra.mxu0 0.0
        %1848 = vmatprep.subr.mxu0 0.0
        %1849 = vmatpush2.xpose.msra.mxu0 0.0
        %1850 = vmatprep.subr.mxu0 0.0
        %1851 = vmatpush2.xpose.msra.mxu0 0.0
        %1852 = vmatprep.subr.mxu0 0.0
        %1853 = vmatpush2.xpose.msra.mxu0 0.0
        %1854 = vmatprep.subr.mxu0 0.0
        %1855 = vmatpush2.xpose.msra.mxu0 0.0
        %1856 = vmatprep.subr.mxu0 0.0
        %1857 = vmatpush2.xpose.msra.mxu0 0.0
        %1858 = vmatprep.subr.mxu0 0.0
        %1859 = vmatpush2.xpose.msra.mxu0 0.0
        %1860 = vmatprep.subr.mxu0 0.0
        %1861 = vmatpush2.xpose.msra.mxu0 0.0
        %1862 = vmatprep.subr.mxu0 0.0
        %1863 = vmatpush2.xpose.msra.mxu0 0.0
        %1864 = vmatprep.subr.mxu0 0.0
        %1865 = vmatpush2.xpose.msra.mxu0 0.0
        %1866 = vmatprep.subr.mxu0 0.0
        %1867 = vmatpush2.xpose.msra.mxu0 0.0
        %1868 = vmatprep.subr.mxu0 0.0
        %1869 = vmatpush2.xpose.msra.mxu0 0.0
        %1870 = vmatprep.subr.mxu0 0.0
        %1871 = vmatpush2.xpose.msra.mxu0 0.0
        %1872 = vmatprep.subr.mxu0 0.0
        %1873 = vmatpush2.xpose.msra.mxu0 0.0
        %1874 = vmatprep.subr.mxu0 0.0
        %1875 = vmatpush2.xpose.msra.mxu0 0.0
        %1876 = vmatprep.subr.mxu0 0.0
        %1877 = vmatpush2.xpose.msra.mxu0 0.0
        %1878 = vmatprep.mubr.f32.mxu0 0.0
        %1879 = vmatmul.mubr.f32.gmra.mxu0 %v1809
        %v1880 = vpop.f32.mrf.mxu0
        %v1881 = vadd.f32 0.0, %v1880
        %v1882 = vpop.f32.mrf.mxu0
        %1883 = vdwg.mxu0
        %v1884 = vsub.f32 %v1806, %v1881
        %1885 = vmatprep.subr.mxu0 0.0
        %1886 = vmatpush1.xpose.msra.mxu0 0.0
        %1887 = vmatprep.subr.mxu0 0.0
        %1888 = vmatpush1.xpose.msra.mxu0 0.0
        %1889 = vmatprep.subr.mxu0 0.0
        %1890 = vmatpush1.xpose.msra.mxu0 0.0
        %1891 = vmatprep.subr.mxu0 0.0
        %1892 = vmatpush1.xpose.msra.mxu0 0.0
        %1893 = vmatprep.subr.mxu0 0.0
        %1894 = vmatpush1.xpose.msra.mxu0 0.0
        %1895 = vmatprep.subr.mxu0 0.0
        %1896 = vmatpush1.xpose.msra.mxu0 0.0
        %1897 = vmatprep.subr.mxu0 0.0
        %1898 = vmatpush1.xpose.msra.mxu0 0.0
        %1899 = vmatprep.subr.mxu0 0.0
        %1900 = vmatpush1.xpose.msra.mxu0 0.0
        %1901 = vmatprep.subr.mxu0 0.0
        %1902 = vmatpush1.xpose.msra.mxu0 0.0
        %1903 = vmatprep.subr.mxu0 0.0
        %1904 = vmatpush1.xpose.msra.mxu0 0.0
        %1905 = vmatprep.subr.mxu0 0.0
        %1906 = vmatpush1.xpose.msra.mxu0 0.0
        %1907 = vmatprep.subr.mxu0 0.0
        %1908 = vmatpush1.xpose.msra.mxu0 0.0
        %1909 = vmatprep.subr.mxu0 0.0
        %1910 = vmatpush1.xpose.msra.mxu0 0.0
        %1911 = vmatprep.subr.mxu0 0.0
        %1912 = vmatpush1.xpose.msra.mxu0 0.0
        %1913 = vmatprep.subr.mxu0 0.0
        %1914 = vmatpush1.xpose.msra.mxu0 0.0
        %1915 = vmatprep.subr.mxu0 0.0
        %1916 = vmatpush1.xpose.msra.mxu0 %v1737
        %1917 = vmatprep.subr.mxu0 0.0
        %1918 = vmatpush2.xpose.msra.mxu0 0.0
        %1919 = vmatprep.subr.mxu0 0.0
        %1920 = vmatpush2.xpose.msra.mxu0 0.0
        %1921 = vmatprep.subr.mxu0 0.0
        %1922 = vmatpush2.xpose.msra.mxu0 0.0
        %1923 = vmatprep.subr.mxu0 0.0
        %1924 = vmatpush2.xpose.msra.mxu0 0.0
        %1925 = vmatprep.subr.mxu0 0.0
        %1926 = vmatpush2.xpose.msra.mxu0 0.0
        %1927 = vmatprep.subr.mxu0 0.0
        %1928 = vmatpush2.xpose.msra.mxu0 0.0
        %1929 = vmatprep.subr.mxu0 0.0
        %1930 = vmatpush2.xpose.msra.mxu0 0.0
        %1931 = vmatprep.subr.mxu0 0.0
        %1932 = vmatpush2.xpose.msra.mxu0 0.0
        %1933 = vmatprep.subr.mxu0 0.0
        %1934 = vmatpush2.xpose.msra.mxu0 0.0
        %1935 = vmatprep.subr.mxu0 0.0
        %1936 = vmatpush2.xpose.msra.mxu0 0.0
        %1937 = vmatprep.subr.mxu0 0.0
        %1938 = vmatpush2.xpose.msra.mxu0 0.0
        %1939 = vmatprep.subr.mxu0 0.0
        %1940 = vmatpush2.xpose.msra.mxu0 0.0
        %1941 = vmatprep.subr.mxu0 0.0
        %1942 = vmatpush2.xpose.msra.mxu0 0.0
        %1943 = vmatprep.subr.mxu0 0.0
        %1944 = vmatpush2.xpose.msra.mxu0 0.0
        %1945 = vmatprep.subr.mxu0 0.0
        %1946 = vmatpush2.xpose.msra.mxu0 0.0
        %1947 = vmatprep.subr.mxu0 0.0
        %1948 = vmatpush2.xpose.msra.mxu0 0.0
        %1949 = vmatprep.mubr.f32.mxu0 0.0
        %1950 = vmatmul.mubr.f32.gmra.mxu0 %v1809
        %v1951 = vpop.f32.mrf.mxu0
        %v1952 = vadd.f32 0.0, %v1951
        %v1953 = vpop.f32.mrf.mxu0
        %1954 = vdwg.mxu0
        %1955 = vmatprep.subr.mxu0 0.0
        %1956 = vmatpush1.xpose.msra.mxu0 0.0
        %1957 = vmatprep.subr.mxu0 0.0
        %1958 = vmatpush1.xpose.msra.mxu0 0.0
        %1959 = vmatprep.subr.mxu0 0.0
        %1960 = vmatpush1.xpose.msra.mxu0 0.0
        %1961 = vmatprep.subr.mxu0 0.0
        %1962 = vmatpush1.xpose.msra.mxu0 0.0
        %1963 = vmatprep.subr.mxu0 0.0
        %1964 = vmatpush1.xpose.msra.mxu0 0.0
        %1965 = vmatprep.subr.mxu0 0.0
        %1966 = vmatpush1.xpose.msra.mxu0 0.0
        %1967 = vmatprep.subr.mxu0 0.0
        %1968 = vmatpush1.xpose.msra.mxu0 0.0
        %1969 = vmatprep.subr.mxu0 0.0
        %1970 = vmatpush1.xpose.msra.mxu0 0.0
        %1971 = vmatprep.subr.mxu0 0.0
        %1972 = vmatpush1.xpose.msra.mxu0 0.0
        %1973 = vmatprep.subr.mxu0 0.0
        %1974 = vmatpush1.xpose.msra.mxu0 0.0
        %1975 = vmatprep.subr.mxu0 0.0
        %1976 = vmatpush1.xpose.msra.mxu0 0.0
        %1977 = vmatprep.subr.mxu0 0.0
        %1978 = vmatpush1.xpose.msra.mxu0 0.0
        %1979 = vmatprep.subr.mxu0 0.0
        %1980 = vmatpush1.xpose.msra.mxu0 0.0
        %1981 = vmatprep.subr.mxu0 0.0
        %1982 = vmatpush1.xpose.msra.mxu0 0.0
        %1983 = vmatprep.subr.mxu0 0.0
        %1984 = vmatpush1.xpose.msra.mxu0 0.0
        %1985 = vmatprep.subr.mxu0 0.0
        %1986 = vmatpush1.xpose.msra.mxu0 %v1812
        %1987 = vmatprep.subr.mxu0 0.0
        %1988 = vmatpush2.xpose.msra.mxu0 0.0
        %1989 = vmatprep.subr.mxu0 0.0
        %1990 = vmatpush2.xpose.msra.mxu0 0.0
        %1991 = vmatprep.subr.mxu0 0.0
        %1992 = vmatpush2.xpose.msra.mxu0 0.0
        %1993 = vmatprep.subr.mxu0 0.0
        %1994 = vmatpush2.xpose.msra.mxu0 0.0
        %1995 = vmatprep.subr.mxu0 0.0
        %1996 = vmatpush2.xpose.msra.mxu0 0.0
        %1997 = vmatprep.subr.mxu0 0.0
        %1998 = vmatpush2.xpose.msra.mxu0 0.0
        %1999 = vmatprep.subr.mxu0 0.0
        %2000 = vmatpush2.xpose.msra.mxu0 0.0
        %2001 = vmatprep.subr.mxu0 0.0
        %2002 = vmatpush2.xpose.msra.mxu0 0.0
        %2003 = vmatprep.subr.mxu0 0.0
        %2004 = vmatpush2.xpose.msra.mxu0 0.0
        %2005 = vmatprep.subr.mxu0 0.0
        %2006 = vmatpush2.xpose.msra.mxu0 0.0
        %2007 = vmatprep.subr.mxu0 0.0
        %2008 = vmatpush2.xpose.msra.mxu0 0.0
        %2009 = vmatprep.subr.mxu0 0.0
        %2010 = vmatpush2.xpose.msra.mxu0 0.0
        %2011 = vmatprep.subr.mxu0 0.0
        %2012 = vmatpush2.xpose.msra.mxu0 0.0
        %2013 = vmatprep.subr.mxu0 0.0
        %2014 = vmatpush2.xpose.msra.mxu0 0.0
        %2015 = vmatprep.subr.mxu0 0.0
        %2016 = vmatpush2.xpose.msra.mxu0 0.0
        %2017 = vmatprep.subr.mxu0 0.0
        %2018 = vmatpush2.xpose.msra.mxu0 0.0
        %2019 = vmatprep.mubr.f32.mxu0 0.0
        %2020 = vmatmul.mubr.f32.gmra.mxu0 %v1734
        %v2021 = vpop.f32.mrf.mxu0
        %v2022 = vadd.f32 %v1952, %v2021
        %v2023 = vpop.f32.mrf.mxu0
        %2024 = vdwg.mxu0
        %v2025 = vlaneseq
        %v2026 = vshrl.u32 %v2025, 7
        %v2027 = vsub.s32 0, %v2026
        %v2028 = vrot.slane %v1884, %v2027
        %v2029 = vmul.f32 %v2028, %v313
        %v2030 = vlaneseq
        %v2031 = vshrl.u32 %v2030, 7
        %v2032 = vsub.s32 0, %v2031
        %v2033 = vrot.slane %v2022, %v2032
        %v2034 = vmul.f32 %v2033, %v318
        %v2035 = vsub.f32 %v2029, %v2034
        %v2036 = vmul.f32 %v2028, %v318
        %v2037 = vmul.f32 %v2033, %v313
        %v2038 = vadd.f32 %v2036, %v2037
        %v2039 = vlaneseq
        %v2040 = vshrl.u32 %v2039, 7
        %v2041 = vsub.s32 1, %v2040
        %v2042 = vrot.slane %v1884, %v2041
        %v2043 = vmul.f32 %v2042, %v314
        %v2044 = vadd.f32 %v2035, %v2043
        %v2045 = vlaneseq
        %v2046 = vshrl.u32 %v2045, 7
        %v2047 = vsub.s32 1, %v2046
        %v2048 = vrot.slane %v2022, %v2047
        %v2049 = vmul.f32 %v2048, %v319
        %v2050 = vsub.f32 %v2044, %v2049
        %v2051 = vmul.f32 %v2042, %v319
        %v2052 = vadd.f32 %v2038, %v2051
        %v2053 = vmul.f32 %v2048, %v314
        %v2054 = vadd.f32 %v2052, %v2053
        %v2055 = vlaneseq
        %v2056 = vshrl.u32 %v2055, 7
        %v2057 = vsub.s32 2, %v2056
        %v2058 = vrot.slane %v1884, %v2057
        %v2059 = vmul.f32 %v2058, %v315
        %v2060 = vadd.f32 %v2050, %v2059
        %v2061 = vlaneseq
        %v2062 = vshrl.u32 %v2061, 7
        %v2063 = vsub.s32 2, %v2062
        %v2064 = vrot.slane %v2022, %v2063
        %v2065 = vmul.f32 %v2064, %v320
        %v2066 = vsub.f32 %v2060, %v2065
        %v2067 = vmul.f32 %v2058, %v320
        %v2068 = vadd.f32 %v2054, %v2067
        %v2069 = vmul.f32 %v2064, %v315
        %v2070 = vadd.f32 %v2068, %v2069
        %v2071 = vlaneseq
        %v2072 = vshrl.u32 %v2071, 7
        %v2073 = vsub.s32 3, %v2072
        %v2074 = vrot.slane %v1884, %v2073
        %v2075 = vmul.f32 %v2074, %v316
        %v2076 = vadd.f32 %v2066, %v2075
        %v2077 = vlaneseq
        %v2078 = vshrl.u32 %v2077, 7
        %v2079 = vsub.s32 3, %v2078
        %v2080 = vrot.slane %v2022, %v2079
        %v2081 = vmul.f32 %v2080, %v321
        %v2082 = vsub.f32 %v2076, %v2081
        %v2083 = vmul.f32 %v2074, %v321
        %v2084 = vadd.f32 %v2070, %v2083
        %v2085 = vmul.f32 %v2080, %v316
        %v2086 = vadd.f32 %v2084, %v2085
        %s2087 = scalar_lea.vmem %s307, 8 [#allocation4]
        %2088 = vst.msk [vmem:[%s2087] sm:$0xf] %vm1203, %v2082
        %s2089 = scalar_lea.vmem %s307, 12 [#allocation4]
        %2090 = vst.msk [vmem:[%s2089] sm:$0xf] %vm1203, %v2086
        %s2091 = sand.u32 %s103, 1
        %s2092 = scalar_lea.sflag [#allocation5], %s2091
        %s2093 = sand.u32 %s103, 1
        %s2094 = smul.addr %s2093, 16
        %s2095 = scalar_lea.vmem [#allocation4], %s2094
        // Predicated region
        $region112: #{tpu_custom_call.1} parent=102 // pred_check
          %p2096 = pneg %p113
        $region113: #{tpu_custom_call.1} parent=102 // pred_check_branch
          %2098 = sbr.rel (%p2096) target = $region115
        $region114: #{tpu_custom_call.1} parent=102 // pred_region
          #allocation7 [shape = 'u32[6]{0}', space=smem, size = 0x18, scoped, tag = 'DMA stride descriptor']
          %s2100 = ssub.s32 256, 256
          %2101 = vsyncadd %s2092, %s2100
          %s2102 = smul.addr %s17, 2
          %s2103 = smul.addr %s2102, 64
          %s2104 = scalar_lea.hbm %s3, %s2103
          %s2106 = sshll.u32 1, 14
          %s2107 = sxor.u32 4294967295, %s2106
          %s2110 = sshll.u32 7, 18
          %s2111 = sxor.u32 4294967295, %s2110
          %s2112 = sand.u32 0, %s2111
          %s2114 = sor.u32 %s2112, 0
          %s2115 = sshll.u32 %s2095, 4
          %s2116 = int_to_ptr.vmem [resolvable:$true] %s2115
          %2122 = sst [smem:[#allocation7]] 128
          %s2123 = scalar_lea.smem [#allocation7], 1
          %2124 = sst [smem:[%s2123]] 1024
          %s2125 = scalar_lea.smem [#allocation7], 2
          %2126 = sst [smem:[%s2125]] 2
          %s2127 = scalar_lea.smem [#allocation7], 3
          %2128 = sst [smem:[%s2127]] 64
          %s2129 = scalar_lea.smem [#allocation7], 4
          %2130 = sst [smem:[%s2129]] 64
          %s2131 = scalar_lea.smem [#allocation7], 5
          %2132 = sst [smem:[%s2131]] 4
          %2134 = dma.general %s2116, 256, %s2104, %s2092, 131072, [#allocation7], %s2114, 0
        $region115: #{tpu_custom_call.1} parent=102 // pred_fallthru
          _
      $region103: #{tpu_custom_call.1} parent=5 // pred_fallthru
        _
      %p2135 = scmp.le.s32.totalorder 2, %s12
      // Predicated region
      $region116: #{tpu_custom_call.1} parent=5 // pred_check
        %p2136 = pneg %p2135
      $region117: #{tpu_custom_call.1} parent=5 // pred_check_branch
        %2138 = sbr.rel (%p2136) target = $region119
      $region118: #{tpu_custom_call.1} parent=5 // pred_region
        %s2139 = ssub.s32 %s12, 2
        // Predicated region
        $region120: #{tpu_custom_call.1} parent=118 // pred_check
          %p2140 = pneg %p119
        $region121: #{tpu_custom_call.1} parent=118 // pred_check_branch
          %2142 = sbr.rel (%p2140) target = $region123
        $region122: #{tpu_custom_call.1} parent=118 // pred_region
          %s2143 = sand.u32 %s104, 1
          %s2144 = scalar_lea.sflag [#allocation5], %s2143
          %s2145 = sand.u32 %s104, 1
          %s2146 = smul.addr %s2145, 16
          %s2147 = scalar_lea.vmem [#allocation4], %s2146
          %2148 = dma.done %s2144, 256
        $region123: #{tpu_custom_call.1} parent=118 // pred_fallthru
          _
      $region119: #{tpu_custom_call.1} parent=5 // pred_fallthru
        _
    $region6: #{tpu_custom_call.1} parent=1 // loop_footer
      %s16 = sadd.s32 1, %s12
    $region7: #{tpu_custom_call.1} parent=1 // loop_footer_branch
      %11 = sbr.rel target = $region3
    $region8: #{tpu_custom_call.1} parent=1 // loop_exit
      _
    %2149 = vsyncpa [#allocation5], 1
    %s2150 = scalar_lea.sflag [#allocation5], 1
    %2151 = vsyncpa %s2150, 1

</llo_original>
